<compile_context>
chip_gen: v5e
topology: v5e:2x2
jax: 0.10.0
libtpu: 0.0.40
codegen_flags: <defaults>
</compile_context>

<pallas_src>
import functools

import jax
import jax.numpy as jnp
from jax import lax
from jax.experimental import pallas as pl
from jax.experimental.pallas import tpu as pltpu


def mha_kernel(x_ref, wqkv_ref, bqkv_ref, wo_ref, bo_ref,
               out_ref, attn_ref, acc_ref, *, num_heads, head_dim):
    """One grid step == one batch element.

    x_ref:    (1, S, H)          VMEM
    wqkv_ref: (H, 3H)            VMEM, [Wq*scale | Wk | Wv], layout (in, out)
    bqkv_ref: (1, 3H)            VMEM, [bq*scale | bk | bv]
    wo_ref:   (H, H)             VMEM, layout (in, out)
    bo_ref:   (1, H)             VMEM
    out_ref:  (1, S, H)
    attn_ref: (1, num_heads, S, S)
    acc_ref:  (S, H)             VMEM scratch: concatenated head outputs
    """
    H = num_heads * head_dim
    x = x_ref[0]                                                    # (S, H)

    # Fused Q/K/V projection: one MXU pass with N = 3H.
    qkv = jnp.dot(x, wqkv_ref[...],
                  preferred_element_type=jnp.float32) + bqkv_ref[0]  # (S, 3H)

    for h in range(num_heads):                 # static unroll over heads
        lo = h * head_dim
        qh = qkv[:, lo:lo + head_dim]          # pre-scaled by 1/sqrt(head_dim)
        kh = qkv[:, H + lo:H + lo + head_dim]
        vh = qkv[:, 2 * H + lo:2 * H + lo + head_dim]

        # scores = qh @ kh^T expressed as a contraction (no explicit .T).
        scores = lax.dot_general(
            qh, kh, dimension_numbers=(((1,), (1,)), ((), ())),
            preferred_element_type=jnp.float32)                     # (S, S)

        # Numerically-stable softmax; one reciprocal per row, then multiplies.
        m = jnp.max(scores, axis=-1, keepdims=True)
        e = jnp.exp(scores - m)
        s = jnp.sum(e, axis=-1, keepdims=True)
        w = e * (1.0 / s)                                           # (S, S)

        attn_ref[0, h] = w
        # Write this head's output at its lane offset (no concatenate).
        acc_ref[:, pl.ds(lo, head_dim)] = jnp.dot(
            w, vh, preferred_element_type=jnp.float32)

    out = jnp.dot(acc_ref[...], wo_ref[...],
                  preferred_element_type=jnp.float32) + bo_ref[0]
    out_ref[0] = out.astype(out_ref.dtype)


def _const_spec(shape, single_buffer):
    """BlockSpec for a grid-constant operand (weights / biases)."""
    if single_buffer:
        # Constant index_map -> nothing to pipeline; don't keep 2 VMEM copies.
        return pl.BlockSpec(shape, lambda b: (0, 0),
                            pipeline_mode=pl.Buffered(buffer_count=1))
    return pl.BlockSpec(shape, lambda b: (0, 0))


def _build_mha_call(B, S, H, num_heads, dtype, *, single_buffer_weights):
    head_dim = H // num_heads
    kernel = functools.partial(mha_kernel,
                               num_heads=num_heads, head_dim=head_dim)

    # Rough per-step VMEM need (f32 bytes): pipelined IO blocks (x, out, attn)
    # double-buffered + weights (1 or 2 copies) + scratch; generous headroom.
    io_bytes = 2 * (2 * S * H + num_heads * S * S) * 4
    w_copies = 1 if single_buffer_weights else 2
    w_bytes = (H * 3 * H + 3 * H + H * H + H) * 4 * w_copies
    scratch_bytes = S * H * 4
    vmem_limit = min(max(2 * (io_bytes + w_bytes + scratch_bytes),
                         16 * 1024 * 1024),
                     64 * 1024 * 1024)

    grid_spec = pltpu.PrefetchScalarGridSpec(
        num_scalar_prefetch=0,
        grid=(B,),
        in_specs=[
            pl.BlockSpec((1, S, H), lambda b: (b, 0, 0)),           # x
            _const_spec((H, 3 * H), single_buffer_weights),         # Wqkv
            _const_spec((1, 3 * H), single_buffer_weights),         # bqkv
            _const_spec((H, H), single_buffer_weights),             # Wo
            _const_spec((1, H), single_buffer_weights),             # bo
        ],
        out_specs=[
            pl.BlockSpec((1, S, H), lambda b: (b, 0, 0)),
            pl.BlockSpec((1, num_heads, S, S), lambda b: (b, 0, 0, 0)),
        ],
        scratch_shapes=[pltpu.VMEM((S, H), jnp.float32)],
    )

    return pl.pallas_call(
        kernel,
        out_shape=(
            jax.ShapeDtypeStruct((B, S, H), dtype),
            jax.ShapeDtypeStruct((B, num_heads, S, S), jnp.float32),
        ),
        grid_spec=grid_spec,
        compiler_params=pltpu.CompilerParams(
            dimension_semantics=("parallel",),
            vmem_limit_bytes=vmem_limit),
    )


def multi_head_attention(x, params, *, num_heads):
    """x: (B, S, H) float32. params: wq/wk/wv/wo are (H_out, H_in) like
    torch.nn.Linear, b* are (H,). Returns (out, attention_weights)."""
    B, S, H = x.shape
    assert H % num_heads == 0
    head_dim = H // num_heads
    scale = 1.0 / (head_dim ** 0.5)

    # Pre-transpose weights to (in, out), fuse QKV, and fold the softmax scale
    # into the Q projection so the kernel never multiplies the scores.
    wqkv = jnp.concatenate(
        [params["wq"].T * scale, params["wk"].T, params["wv"].T], axis=1)  # (H, 3H)
    bqkv = jnp.concatenate(
        [params["bq"] * scale, params["bk"], params["bv"]]).reshape(1, 3 * H)
    wo = params["wo"].T
    bo = params["bo"].reshape(1, H)

    args = (x, wqkv, bqkv, wo, bo)
    try:
        call = _build_mha_call(B, S, H, num_heads, x.dtype,
                               single_buffer_weights=True)
        return call(*args)
    except Exception:
        # pipeline_mode=pl.Buffered(1) not supported by this JAX/Mosaic build:
        # fall back to default (double-buffered) weight BlockSpecs.
        call = _build_mha_call(B, S, H, num_heads, x.dtype,
                               single_buffer_weights=False)
        return call(*args)


def reference_mha(x, params, *, num_heads):
    """Plain-JAX reference matching the PyTorch forward."""
    B, S, H = x.shape
    hd = H // num_heads
    q = x @ params["wq"].T + params["bq"]
    k = x @ params["wk"].T + params["bk"]
    v = x @ params["wv"].T + params["bv"]
    q = q.reshape(B, S, num_heads, hd).transpose(0, 2, 1, 3)
    k = k.reshape(B, S, num_heads, hd).transpose(0, 2, 1, 3)
    v = v.reshape(B, S, num_heads, hd).transpose(0, 2, 1, 3)
    scores = jnp.einsum("bhqd,bhkd->bhqk", q, k) / jnp.sqrt(jnp.float32(hd))
    w = jax.nn.softmax(scores, axis=-1)
    ao = jnp.einsum("bhqk,bhkd->bhqd", w, v)
    ao = ao.transpose(0, 2, 1, 3).reshape(B, S, H)
    out = ao @ params["wo"].T + params["bo"]
    return out, w


def init_params(key, hidden_dim):
    """Deterministic nn.Linear-style init: U(-1/sqrt(in), 1/sqrt(in))."""
    bound = 1.0 / (hidden_dim ** 0.5)
    keys = jax.random.split(key, 8)

    def u(k, shape):
        return jax.random.uniform(k, shape, jnp.float32, -bound, bound)

    return {
        "wq": u(keys[0], (hidden_dim, hidden_dim)), "bq": u(keys[1], (hidden_dim,)),
        "wk": u(keys[2], (hidden_dim, hidden_dim)), "bk": u(keys[3], (hidden_dim,)),
        "wv": u(keys[4], (hidden_dim, hidden_dim)), "bv": u(keys[5], (hidden_dim,)),
        "wo": u(keys[6], (hidden_dim, hidden_dim)), "bo": u(keys[7], (hidden_dim,)),
    }


if __name__ == "__main__":
    B, S, H = 2, 8, 32
    NUM_HEADS = 4

    key = jax.random.PRNGKey(0)
    kx, kp = jax.random.split(key)
    x = jax.random.normal(kx, (B, S, H), jnp.float32)
    params = init_params(kp, H)

    out, attn = multi_head_attention(x, params, num_heads=NUM_HEADS)
    out = jax.block_until_ready(out)
    attn = jax.block_until_ready(attn)

    ref_out, ref_attn = reference_mha(x, params, num_heads=NUM_HEADS)
    assert out.shape == (B, S, H) and attn.shape == (B, NUM_HEADS, S, S)
    assert jnp.allclose(out, ref_out, atol=1e-5, rtol=1e-5), "output mismatch"
    assert jnp.allclose(attn, ref_attn, atol=1e-5, rtol=1e-5), "attn mismatch"

    print("KERNEL_OK")
</pallas_src>

<mosaic_0001>
module attributes {stable_mosaic.version = 11 : i64} {
  func.func @mha_kernel(%arg0: i32, %arg1: memref<1x8x32xf32, #tpu.memory_space<vmem>>, %arg2: memref<32x96xf32, #tpu.memory_space<vmem>>, %arg3: memref<1x96xf32, #tpu.memory_space<vmem>>, %arg4: memref<32x32xf32, #tpu.memory_space<vmem>>, %arg5: memref<1x32xf32, #tpu.memory_space<vmem>>, %arg6: memref<1x8x32xf32, #tpu.memory_space<vmem>>, %arg7: memref<1x4x8x8xf32, #tpu.memory_space<vmem>>, %arg8: memref<8x32xf32, #tpu.memory_space<vmem>>) attributes {dimension_semantics = [#tpu.dimension_semantics<parallel>], iteration_bounds = array<i64: 2>, scalar_prefetch = 0 : i64, scratch_operands = 1 : i64, tpu.core_type = #tpu.core_type<tc>, window_params = [{transform_indices = @transform_0, window_bounds = array<i64: 1, 8, 32>}, {pipeline_mode = #tpu.pipeline_mode<synchronous>, transform_indices = @transform_1, window_bounds = array<i64: 32, 96>}, {pipeline_mode = #tpu.pipeline_mode<synchronous>, transform_indices = @transform_2, window_bounds = array<i64: 1, 96>}, {pipeline_mode = #tpu.pipeline_mode<synchronous>, transform_indices = @transform_3, window_bounds = array<i64: 32, 32>}, {pipeline_mode = #tpu.pipeline_mode<synchronous>, transform_indices = @transform_4, window_bounds = array<i64: 1, 32>}, {transform_indices = @transform_5, window_bounds = array<i64: 1, 8, 32>}, {transform_indices = @transform_6, window_bounds = array<i64: 1, 4, 8, 8>}]} {
    %c0 = arith.constant 0 : index
    %c0_0 = arith.constant 0 : index
    %c0_1 = arith.constant 0 : index
    %0 = vector.load %arg1[%c0, %c0_0, %c0_1] : memref<1x8x32xf32, #tpu.memory_space<vmem>>, vector<1x8x32xf32>
    %1 = vector.shape_cast %0 : vector<1x8x32xf32> to vector<8x32xf32>
    %c0_2 = arith.constant 0 : index
    %c0_3 = arith.constant 0 : index
    %2 = vector.load %arg2[%c0_2, %c0_3] : memref<32x96xf32, #tpu.memory_space<vmem>>, vector<32x96xf32>
    %cst = arith.constant dense<0.000000e+00> : vector<8x96xf32>
    %3 = tpu.matmul %1, %2, %cst {dimension_numbers = #tpu.dot_dimension_numbers<[1], [0], [0], [1], [0, 0, 1, 1], [], []>} : vector<8x32xf32>, vector<32x96xf32>, vector<8x96xf32> -> vector<8x96xf32>
    %c0_4 = arith.constant 0 : index
    %c0_5 = arith.constant 0 : index
    %4 = vector.load %arg3[%c0_4, %c0_5] : memref<1x96xf32, #tpu.memory_space<vmem>>, vector<1x96xf32>
    %5 = vector.shape_cast %4 : vector<1x96xf32> to vector<96xf32>
    %6 = vector.shape_cast %5 : vector<96xf32> to vector<1x96xf32>
    %7 = vector.broadcast %6 : vector<1x96xf32> to vector<8x96xf32>
    %8 = arith.addf %3, %7 : vector<8x96xf32>
    %9 = vector.extract_strided_slice %8 {offsets = [0, 0], sizes = [8, 8], strides = [1, 1]} : vector<8x96xf32> to vector<8x8xf32>
    %10 = vector.extract_strided_slice %8 {offsets = [0, 32], sizes = [8, 8], strides = [1, 1]} : vector<8x96xf32> to vector<8x8xf32>
    %11 = vector.extract_strided_slice %8 {offsets = [0, 64], sizes = [8, 8], strides = [1, 1]} : vector<8x96xf32> to vector<8x8xf32>
    %cst_6 = arith.constant dense<0.000000e+00> : vector<8x8xf32>
    %12 = tpu.matmul %9, %10, %cst_6 {dimension_numbers = #tpu.dot_dimension_numbers<[1], [1], [0], [0], [0, 0, 1, 0], [], []>} : vector<8x8xf32>, vector<8x8xf32>, vector<8x8xf32> -> vector<8x8xf32>
    %cst_7 = arith.constant dense<0xFF800000> : vector<8xf32>
    %13 = vector.multi_reduction <maximumf>, %12, %cst_7 [1] : vector<8x8xf32> to vector<8xf32>
    %14 = vector.shape_cast %13 : vector<8xf32> to vector<8x1xf32>
    %15 = vector.broadcast %14 : vector<8x1xf32> to vector<8x8xf32>
    %16 = arith.subf %12, %15 : vector<8x8xf32>
    %17 = math.exp %16 : vector<8x8xf32>
    %cst_8 = arith.constant dense<0.000000e+00> : vector<8xf32>
    %18 = vector.multi_reduction <add>, %17, %cst_8 [1] : vector<8x8xf32> to vector<8xf32>
    %19 = vector.shape_cast %18 : vector<8xf32> to vector<8x1xf32>
    %cst_9 = arith.constant 1.000000e+00 : f32
    %20 = vector.broadcast %cst_9 : f32 to vector<8x1xf32>
    %21 = arith.divf %20, %19 : vector<8x1xf32>
    %22 = vector.broadcast %21 : vector<8x1xf32> to vector<8x8xf32>
    %23 = arith.mulf %17, %22 : vector<8x8xf32>
    %c0_10 = arith.constant 0 : index
    %c0_11 = arith.constant 0 : index
    %c0_12 = arith.constant 0 : index
    %c0_13 = arith.constant 0 : index
    %24 = vector.load %arg7[%c0_10, %c0_11, %c0_12, %c0_13] : memref<1x4x8x8xf32, #tpu.memory_space<vmem>>, vector<1x1x8x8xf32>
    %25 = vector.shape_cast %24 : vector<1x1x8x8xf32> to vector<8x8xf32>
    %26 = vector.shape_cast %23 : vector<8x8xf32> to vector<1x1x8x8xf32>
    tpu.vector_store %arg7[%c0_10, %c0_11, %c0_12, %c0_13], %26 {strides = array<i32>} : memref<1x4x8x8xf32, #tpu.memory_space<vmem>>, vector<1x1x8x8xf32>,
    %cst_14 = arith.constant dense<0.000000e+00> : vector<8x8xf32>
    %27 = tpu.matmul %23, %11, %cst_14 {dimension_numbers = #tpu.dot_dimension_numbers<[1], [0], [0], [1], [0, 0, 1, 1], [], []>} : vector<8x8xf32>, vector<8x8xf32>, vector<8x8xf32> -> vector<8x8xf32>
    %c0_15 = arith.constant 0 : index
    %c0_16 = arith.constant 0 : index
    %28 = vector.load %arg8[%c0_15, %c0_16] : memref<8x32xf32, #tpu.memory_space<vmem>>, vector<8x8xf32>
    tpu.vector_store %arg8[%c0_15, %c0_16], %27 {strides = array<i32>} : memref<8x32xf32, #tpu.memory_space<vmem>>, vector<8x8xf32>,
    %29 = vector.extract_strided_slice %8 {offsets = [0, 8], sizes = [8, 8], strides = [1, 1]} : vector<8x96xf32> to vector<8x8xf32>
    %30 = vector.extract_strided_slice %8 {offsets = [0, 40], sizes = [8, 8], strides = [1, 1]} : vector<8x96xf32> to vector<8x8xf32>
    %31 = vector.extract_strided_slice %8 {offsets = [0, 72], sizes = [8, 8], strides = [1, 1]} : vector<8x96xf32> to vector<8x8xf32>
    %cst_17 = arith.constant dense<0.000000e+00> : vector<8x8xf32>
    %32 = tpu.matmul %29, %30, %cst_17 {dimension_numbers = #tpu.dot_dimension_numbers<[1], [1], [0], [0], [0, 0, 1, 0], [], []>} : vector<8x8xf32>, vector<8x8xf32>, vector<8x8xf32> -> vector<8x8xf32>
    %cst_18 = arith.constant dense<0xFF800000> : vector<8xf32>
    %33 = vector.multi_reduction <maximumf>, %32, %cst_18 [1] : vector<8x8xf32> to vector<8xf32>
    %34 = vector.shape_cast %33 : vector<8xf32> to vector<8x1xf32>
    %35 = vector.broadcast %34 : vector<8x1xf32> to vector<8x8xf32>
    %36 = arith.subf %32, %35 : vector<8x8xf32>
    %37 = math.exp %36 : vector<8x8xf32>
    %cst_19 = arith.constant dense<0.000000e+00> : vector<8xf32>
    %38 = vector.multi_reduction <add>, %37, %cst_19 [1] : vector<8x8xf32> to vector<8xf32>
    %39 = vector.shape_cast %38 : vector<8xf32> to vector<8x1xf32>
    %cst_20 = arith.constant 1.000000e+00 : f32
    %40 = vector.broadcast %cst_20 : f32 to vector<8x1xf32>
    %41 = arith.divf %40, %39 : vector<8x1xf32>
    %42 = vector.broadcast %41 : vector<8x1xf32> to vector<8x8xf32>
    %43 = arith.mulf %37, %42 : vector<8x8xf32>
    %c0_21 = arith.constant 0 : index
    %c1 = arith.constant 1 : index
    %c0_22 = arith.constant 0 : index
    %c0_23 = arith.constant 0 : index
    %44 = vector.load %arg7[%c0_21, %c1, %c0_22, %c0_23] : memref<1x4x8x8xf32, #tpu.memory_space<vmem>>, vector<1x1x8x8xf32>
    %45 = vector.shape_cast %44 : vector<1x1x8x8xf32> to vector<8x8xf32>
    %46 = vector.shape_cast %43 : vector<8x8xf32> to vector<1x1x8x8xf32>
    tpu.vector_store %arg7[%c0_21, %c1, %c0_22, %c0_23], %46 {strides = array<i32>} : memref<1x4x8x8xf32, #tpu.memory_space<vmem>>, vector<1x1x8x8xf32>,
    %cst_24 = arith.constant dense<0.000000e+00> : vector<8x8xf32>
    %47 = tpu.matmul %43, %31, %cst_24 {dimension_numbers = #tpu.dot_dimension_numbers<[1], [0], [0], [1], [0, 0, 1, 1], [], []>} : vector<8x8xf32>, vector<8x8xf32>, vector<8x8xf32> -> vector<8x8xf32>
    %c0_25 = arith.constant 0 : index
    %c8 = arith.constant 8 : index
    %48 = vector.load %arg8[%c0_25, %c8] : memref<8x32xf32, #tpu.memory_space<vmem>>, vector<8x8xf32>
    tpu.vector_store %arg8[%c0_25, %c8], %47 {strides = array<i32>} : memref<8x32xf32, #tpu.memory_space<vmem>>, vector<8x8xf32>,
    %49 = vector.extract_strided_slice %8 {offsets = [0, 16], sizes = [8, 8], strides = [1, 1]} : vector<8x96xf32> to vector<8x8xf32>
    %50 = vector.extract_strided_slice %8 {offsets = [0, 48], sizes = [8, 8], strides = [1, 1]} : vector<8x96xf32> to vector<8x8xf32>
    %51 = vector.extract_strided_slice %8 {offsets = [0, 80], sizes = [8, 8], strides = [1, 1]} : vector<8x96xf32> to vector<8x8xf32>
    %cst_26 = arith.constant dense<0.000000e+00> : vector<8x8xf32>
    %52 = tpu.matmul %49, %50, %cst_26 {dimension_numbers = #tpu.dot_dimension_numbers<[1], [1], [0], [0], [0, 0, 1, 0], [], []>} : vector<8x8xf32>, vector<8x8xf32>, vector<8x8xf32> -> vector<8x8xf32>
    %cst_27 = arith.constant dense<0xFF800000> : vector<8xf32>
    %53 = vector.multi_reduction <maximumf>, %52, %cst_27 [1] : vector<8x8xf32> to vector<8xf32>
    %54 = vector.shape_cast %53 : vector<8xf32> to vector<8x1xf32>
    %55 = vector.broadcast %54 : vector<8x1xf32> to vector<8x8xf32>
    %56 = arith.subf %52, %55 : vector<8x8xf32>
    %57 = math.exp %56 : vector<8x8xf32>
    %cst_28 = arith.constant dense<0.000000e+00> : vector<8xf32>
    %58 = vector.multi_reduction <add>, %57, %cst_28 [1] : vector<8x8xf32> to vector<8xf32>
    %59 = vector.shape_cast %58 : vector<8xf32> to vector<8x1xf32>
    %cst_29 = arith.constant 1.000000e+00 : f32
    %60 = vector.broadcast %cst_29 : f32 to vector<8x1xf32>
    %61 = arith.divf %60, %59 : vector<8x1xf32>
    %62 = vector.broadcast %61 : vector<8x1xf32> to vector<8x8xf32>
    %63 = arith.mulf %57, %62 : vector<8x8xf32>
    %c0_30 = arith.constant 0 : index
    %c2 = arith.constant 2 : index
    %c0_31 = arith.constant 0 : index
    %c0_32 = arith.constant 0 : index
    %64 = vector.load %arg7[%c0_30, %c2, %c0_31, %c0_32] : memref<1x4x8x8xf32, #tpu.memory_space<vmem>>, vector<1x1x8x8xf32>
    %65 = vector.shape_cast %64 : vector<1x1x8x8xf32> to vector<8x8xf32>
    %66 = vector.shape_cast %63 : vector<8x8xf32> to vector<1x1x8x8xf32>
    tpu.vector_store %arg7[%c0_30, %c2, %c0_31, %c0_32], %66 {strides = array<i32>} : memref<1x4x8x8xf32, #tpu.memory_space<vmem>>, vector<1x1x8x8xf32>,
    %cst_33 = arith.constant dense<0.000000e+00> : vector<8x8xf32>
    %67 = tpu.matmul %63, %51, %cst_33 {dimension_numbers = #tpu.dot_dimension_numbers<[1], [0], [0], [1], [0, 0, 1, 1], [], []>} : vector<8x8xf32>, vector<8x8xf32>, vector<8x8xf32> -> vector<8x8xf32>
    %c0_34 = arith.constant 0 : index
    %c16 = arith.constant 16 : index
    %68 = vector.load %arg8[%c0_34, %c16] : memref<8x32xf32, #tpu.memory_space<vmem>>, vector<8x8xf32>
    tpu.vector_store %arg8[%c0_34, %c16], %67 {strides = array<i32>} : memref<8x32xf32, #tpu.memory_space<vmem>>, vector<8x8xf32>,
    %69 = vector.extract_strided_slice %8 {offsets = [0, 24], sizes = [8, 8], strides = [1, 1]} : vector<8x96xf32> to vector<8x8xf32>
    %70 = vector.extract_strided_slice %8 {offsets = [0, 56], sizes = [8, 8], strides = [1, 1]} : vector<8x96xf32> to vector<8x8xf32>
    %71 = vector.extract_strided_slice %8 {offsets = [0, 88], sizes = [8, 8], strides = [1, 1]} : vector<8x96xf32> to vector<8x8xf32>
    %cst_35 = arith.constant dense<0.000000e+00> : vector<8x8xf32>
    %72 = tpu.matmul %69, %70, %cst_35 {dimension_numbers = #tpu.dot_dimension_numbers<[1], [1], [0], [0], [0, 0, 1, 0], [], []>} : vector<8x8xf32>, vector<8x8xf32>, vector<8x8xf32> -> vector<8x8xf32>
    %cst_36 = arith.constant dense<0xFF800000> : vector<8xf32>
    %73 = vector.multi_reduction <maximumf>, %72, %cst_36 [1] : vector<8x8xf32> to vector<8xf32>
    %74 = vector.shape_cast %73 : vector<8xf32> to vector<8x1xf32>
    %75 = vector.broadcast %74 : vector<8x1xf32> to vector<8x8xf32>
    %76 = arith.subf %72, %75 : vector<8x8xf32>
    %77 = math.exp %76 : vector<8x8xf32>
    %cst_37 = arith.constant dense<0.000000e+00> : vector<8xf32>
    %78 = vector.multi_reduction <add>, %77, %cst_37 [1] : vector<8x8xf32> to vector<8xf32>
    %79 = vector.shape_cast %78 : vector<8xf32> to vector<8x1xf32>
    %cst_38 = arith.constant 1.000000e+00 : f32
    %80 = vector.broadcast %cst_38 : f32 to vector<8x1xf32>
    %81 = arith.divf %80, %79 : vector<8x1xf32>
    %82 = vector.broadcast %81 : vector<8x1xf32> to vector<8x8xf32>
    %83 = arith.mulf %77, %82 : vector<8x8xf32>
    %c0_39 = arith.constant 0 : index
    %c3 = arith.constant 3 : index
    %c0_40 = arith.constant 0 : index
    %c0_41 = arith.constant 0 : index
    %84 = vector.load %arg7[%c0_39, %c3, %c0_40, %c0_41] : memref<1x4x8x8xf32, #tpu.memory_space<vmem>>, vector<1x1x8x8xf32>
    %85 = vector.shape_cast %84 : vector<1x1x8x8xf32> to vector<8x8xf32>
    %86 = vector.shape_cast %83 : vector<8x8xf32> to vector<1x1x8x8xf32>
    tpu.vector_store %arg7[%c0_39, %c3, %c0_40, %c0_41], %86 {strides = array<i32>} : memref<1x4x8x8xf32, #tpu.memory_space<vmem>>, vector<1x1x8x8xf32>,
    %cst_42 = arith.constant dense<0.000000e+00> : vector<8x8xf32>
    %87 = tpu.matmul %83, %71, %cst_42 {dimension_numbers = #tpu.dot_dimension_numbers<[1], [0], [0], [1], [0, 0, 1, 1], [], []>} : vector<8x8xf32>, vector<8x8xf32>, vector<8x8xf32> -> vector<8x8xf32>
    %c0_43 = arith.constant 0 : index
    %c24 = arith.constant 24 : index
    %88 = vector.load %arg8[%c0_43, %c24] : memref<8x32xf32, #tpu.memory_space<vmem>>, vector<8x8xf32>
    tpu.vector_store %arg8[%c0_43, %c24], %87 {strides = array<i32>} : memref<8x32xf32, #tpu.memory_space<vmem>>, vector<8x8xf32>,
    %c0_44 = arith.constant 0 : index
    %c0_45 = arith.constant 0 : index
    %89 = vector.load %arg8[%c0_44, %c0_45] : memref<8x32xf32, #tpu.memory_space<vmem>>, vector<8x32xf32>
    %c0_46 = arith.constant 0 : index
    %c0_47 = arith.constant 0 : index
    %90 = vector.load %arg4[%c0_46, %c0_47] : memref<32x32xf32, #tpu.memory_space<vmem>>, vector<32x32xf32>
    %cst_48 = arith.constant dense<0.000000e+00> : vector<8x32xf32>
    %91 = tpu.matmul %89, %90, %cst_48 {dimension_numbers = #tpu.dot_dimension_numbers<[1], [0], [0], [1], [0, 0, 1, 1], [], []>} : vector<8x32xf32>, vector<32x32xf32>, vector<8x32xf32> -> vector<8x32xf32>
    %c0_49 = arith.constant 0 : index
    %c0_50 = arith.constant 0 : index
    %92 = vector.load %arg5[%c0_49, %c0_50] : memref<1x32xf32, #tpu.memory_space<vmem>>, vector<1x32xf32>
    %93 = vector.shape_cast %92 : vector<1x32xf32> to vector<32xf32>
    %94 = vector.shape_cast %93 : vector<32xf32> to vector<1x32xf32>
    %95 = vector.broadcast %94 : vector<1x32xf32> to vector<8x32xf32>
    %96 = arith.addf %91, %95 : vector<8x32xf32>
    %c0_51 = arith.constant 0 : index
    %c0_52 = arith.constant 0 : index
    %c0_53 = arith.constant 0 : index
    %97 = vector.load %arg6[%c0_51, %c0_52, %c0_53] : memref<1x8x32xf32, #tpu.memory_space<vmem>>, vector<1x8x32xf32>
    %98 = vector.shape_cast %97 : vector<1x8x32xf32> to vector<8x32xf32>
    %99 = vector.shape_cast %96 : vector<8x32xf32> to vector<1x8x32xf32>
    tpu.vector_store %arg6[%c0_51, %c0_52, %c0_53], %99 {strides = array<i32>} : memref<1x8x32xf32, #tpu.memory_space<vmem>>, vector<1x8x32xf32>,
    return
  }
  func.func @transform_0(%arg0: i32) -> (i32, i32, i32) {
    %c0_i32 = arith.constant 0 : i32
    %c0_i32_0 = arith.constant 0 : i32
    %c0_i32_1 = arith.constant 0 : i32
    return %arg0, %c0_i32, %c0_i32_0 : i32, i32, i32
  }
  func.func @transform_1(%arg0: i32) -> (i32, i32) {
    %c0_i32 = arith.constant 0 : i32
    %c0_i32_0 = arith.constant 0 : i32
    %c0_i32_1 = arith.constant 0 : i32
    return %c0_i32, %c0_i32_0 : i32, i32
  }
  func.func @transform_2(%arg0: i32) -> (i32, i32) {
    %c0_i32 = arith.constant 0 : i32
    %c0_i32_0 = arith.constant 0 : i32
    %c0_i32_1 = arith.constant 0 : i32
    return %c0_i32, %c0_i32_0 : i32, i32
  }
  func.func @transform_3(%arg0: i32) -> (i32, i32) {
    %c0_i32 = arith.constant 0 : i32
    %c0_i32_0 = arith.constant 0 : i32
    %c0_i32_1 = arith.constant 0 : i32
    return %c0_i32, %c0_i32_0 : i32, i32
  }
  func.func @transform_4(%arg0: i32) -> (i32, i32) {
    %c0_i32 = arith.constant 0 : i32
    %c0_i32_0 = arith.constant 0 : i32
    %c0_i32_1 = arith.constant 0 : i32
    return %c0_i32, %c0_i32_0 : i32, i32
  }
  func.func @transform_5(%arg0: i32) -> (i32, i32, i32) {
    %c0_i32 = arith.constant 0 : i32
    %c0_i32_0 = arith.constant 0 : i32
    %c0_i32_1 = arith.constant 0 : i32
    return %arg0, %c0_i32, %c0_i32_0 : i32, i32, i32
  }
  func.func @transform_6(%arg0: i32) -> (i32, i32, i32, i32) {
    %c0_i32 = arith.constant 0 : i32
    %c0_i32_0 = arith.constant 0 : i32
    %c0_i32_1 = arith.constant 0 : i32
    %c0_i32_2 = arith.constant 0 : i32
    return %arg0, %c0_i32, %c0_i32_0, %c0_i32_1 : i32, i32, i32, i32
  }
}

module attributes {stable_mosaic.version = 11 : i64} {
  func.func @mha_kernel(%arg0: i32, %arg1: memref<1x8x32xf32, #tpu.memory_space<vmem>>, %arg2: memref<32x96xf32, #tpu.memory_space<vmem>>, %arg3: memref<1x96xf32, #tpu.memory_space<vmem>>, %arg4: memref<32x32xf32, #tpu.memory_space<vmem>>, %arg5: memref<1x32xf32, #tpu.memory_space<vmem>>, %arg6: memref<1x8x32xf32, #tpu.memory_space<vmem>>, %arg7: memref<1x4x8x8xf32, #tpu.memory_space<vmem>>, %arg8: memref<8x32xf32, #tpu.memory_space<vmem>>) attributes {dimension_semantics = [#tpu.dimension_semantics<parallel>], iteration_bounds = array<i64: 2>, scalar_prefetch = 0 : i64, scratch_operands = 1 : i64, tpu.core_type = #tpu.core_type<tc>, window_params = [{transform_indices = @transform_0, window_bounds = array<i64: 1, 8, 32>}, {pipeline_mode = #tpu.pipeline_mode<synchronous>, transform_indices = @transform_1, window_bounds = array<i64: 32, 96>}, {pipeline_mode = #tpu.pipeline_mode<synchronous>, transform_indices = @transform_2, window_bounds = array<i64: 1, 96>}, {pipeline_mode = #tpu.pipeline_mode<synchronous>, transform_indices = @transform_3, window_bounds = array<i64: 32, 32>}, {pipeline_mode = #tpu.pipeline_mode<synchronous>, transform_indices = @transform_4, window_bounds = array<i64: 1, 32>}, {transform_indices = @transform_5, window_bounds = array<i64: 1, 8, 32>}, {transform_indices = @transform_6, window_bounds = array<i64: 1, 4, 8, 8>}]} {
    %c0 = arith.constant 0 : index
    %c0_0 = arith.constant 0 : index
    %c0_1 = arith.constant 0 : index
    %0 = vector.load %arg1[%c0, %c0_0, %c0_1] : memref<1x8x32xf32, #tpu.memory_space<vmem>>, vector<1x8x32xf32>
    %1 = vector.shape_cast %0 : vector<1x8x32xf32> to vector<8x32xf32>
    %c0_2 = arith.constant 0 : index
    %c0_3 = arith.constant 0 : index
    %2 = vector.load %arg2[%c0_2, %c0_3] : memref<32x96xf32, #tpu.memory_space<vmem>>, vector<32x96xf32>
    %cst = arith.constant dense<0.000000e+00> : vector<8x96xf32>
    %3 = tpu.matmul %1, %2, %cst {dimension_numbers = #tpu.dot_dimension_numbers<[1], [0], [0], [1], [0, 0, 1, 1], [], []>} : vector<8x32xf32>, vector<32x96xf32>, vector<8x96xf32> -> vector<8x96xf32>
    %c0_4 = arith.constant 0 : index
    %c0_5 = arith.constant 0 : index
    %4 = vector.load %arg3[%c0_4, %c0_5] : memref<1x96xf32, #tpu.memory_space<vmem>>, vector<1x96xf32>
    %5 = vector.shape_cast %4 : vector<1x96xf32> to vector<96xf32>
    %6 = vector.shape_cast %5 : vector<96xf32> to vector<1x96xf32>
    %7 = vector.broadcast %6 : vector<1x96xf32> to vector<8x96xf32>
    %8 = arith.addf %3, %7 : vector<8x96xf32>
    %9 = vector.extract_strided_slice %8 {offsets = [0, 0], sizes = [8, 8], strides = [1, 1]} : vector<8x96xf32> to vector<8x8xf32>
    %10 = vector.extract_strided_slice %8 {offsets = [0, 32], sizes = [8, 8], strides = [1, 1]} : vector<8x96xf32> to vector<8x8xf32>
    %11 = vector.extract_strided_slice %8 {offsets = [0, 64], sizes = [8, 8], strides = [1, 1]} : vector<8x96xf32> to vector<8x8xf32>
    %cst_6 = arith.constant dense<0.000000e+00> : vector<8x8xf32>
    %12 = tpu.matmul %9, %10, %cst_6 {dimension_numbers = #tpu.dot_dimension_numbers<[1], [1], [0], [0], [0, 0, 1, 0], [], []>} : vector<8x8xf32>, vector<8x8xf32>, vector<8x8xf32> -> vector<8x8xf32>
    %cst_7 = arith.constant dense<0xFF800000> : vector<8xf32>
    %13 = vector.multi_reduction <maximumf>, %12, %cst_7 [1] : vector<8x8xf32> to vector<8xf32>
    %14 = vector.shape_cast %13 : vector<8xf32> to vector<8x1xf32>
    %15 = vector.broadcast %14 : vector<8x1xf32> to vector<8x8xf32>
    %16 = arith.subf %12, %15 : vector<8x8xf32>
    %17 = math.exp %16 : vector<8x8xf32>
    %cst_8 = arith.constant dense<0.000000e+00> : vector<8xf32>
    %18 = vector.multi_reduction <add>, %17, %cst_8 [1] : vector<8x8xf32> to vector<8xf32>
    %19 = vector.shape_cast %18 : vector<8xf32> to vector<8x1xf32>
    %cst_9 = arith.constant 1.000000e+00 : f32
    %20 = vector.broadcast %cst_9 : f32 to vector<8x1xf32>
    %21 = arith.divf %20, %19 : vector<8x1xf32>
    %22 = vector.broadcast %21 : vector<8x1xf32> to vector<8x8xf32>
    %23 = arith.mulf %17, %22 : vector<8x8xf32>
    %c0_10 = arith.constant 0 : index
    %c0_11 = arith.constant 0 : index
    %c0_12 = arith.constant 0 : index
    %c0_13 = arith.constant 0 : index
    %24 = vector.load %arg7[%c0_10, %c0_11, %c0_12, %c0_13] : memref<1x4x8x8xf32, #tpu.memory_space<vmem>>, vector<1x1x8x8xf32>
    %25 = vector.shape_cast %24 : vector<1x1x8x8xf32> to vector<8x8xf32>
    %26 = vector.shape_cast %23 : vector<8x8xf32> to vector<1x1x8x8xf32>
    tpu.vector_store %arg7[%c0_10, %c0_11, %c0_12, %c0_13], %26 {strides = array<i32>} : memref<1x4x8x8xf32, #tpu.memory_space<vmem>>, vector<1x1x8x8xf32>,
    %cst_14 = arith.constant dense<0.000000e+00> : vector<8x8xf32>
    %27 = tpu.matmul %23, %11, %cst_14 {dimension_numbers = #tpu.dot_dimension_numbers<[1], [0], [0], [1], [0, 0, 1, 1], [], []>} : vector<8x8xf32>, vector<8x8xf32>, vector<8x8xf32> -> vector<8x8xf32>
    %c0_15 = arith.constant 0 : index
    %c0_16 = arith.constant 0 : index
    %28 = vector.load %arg8[%c0_15, %c0_16] : memref<8x32xf32, #tpu.memory_space<vmem>>, vector<8x8xf32>
    tpu.vector_store %arg8[%c0_15, %c0_16], %27 {strides = array<i32>} : memref<8x32xf32, #tpu.memory_space<vmem>>, vector<8x8xf32>,
    %29 = vector.extract_strided_slice %8 {offsets = [0, 8], sizes = [8, 8], strides = [1, 1]} : vector<8x96xf32> to vector<8x8xf32>
    %30 = vector.extract_strided_slice %8 {offsets = [0, 40], sizes = [8, 8], strides = [1, 1]} : vector<8x96xf32> to vector<8x8xf32>
    %31 = vector.extract_strided_slice %8 {offsets = [0, 72], sizes = [8, 8], strides = [1, 1]} : vector<8x96xf32> to vector<8x8xf32>
    %cst_17 = arith.constant dense<0.000000e+00> : vector<8x8xf32>
    %32 = tpu.matmul %29, %30, %cst_17 {dimension_numbers = #tpu.dot_dimension_numbers<[1], [1], [0], [0], [0, 0, 1, 0], [], []>} : vector<8x8xf32>, vector<8x8xf32>, vector<8x8xf32> -> vector<8x8xf32>
    %cst_18 = arith.constant dense<0xFF800000> : vector<8xf32>
    %33 = vector.multi_reduction <maximumf>, %32, %cst_18 [1] : vector<8x8xf32> to vector<8xf32>
    %34 = vector.shape_cast %33 : vector<8xf32> to vector<8x1xf32>
    %35 = vector.broadcast %34 : vector<8x1xf32> to vector<8x8xf32>
    %36 = arith.subf %32, %35 : vector<8x8xf32>
    %37 = math.exp %36 : vector<8x8xf32>
    %cst_19 = arith.constant dense<0.000000e+00> : vector<8xf32>
    %38 = vector.multi_reduction <add>, %37, %cst_19 [1] : vector<8x8xf32> to vector<8xf32>
    %39 = vector.shape_cast %38 : vector<8xf32> to vector<8x1xf32>
    %cst_20 = arith.constant 1.000000e+00 : f32
    %40 = vector.broadcast %cst_20 : f32 to vector<8x1xf32>
    %41 = arith.divf %40, %39 : vector<8x1xf32>
    %42 = vector.broadcast %41 : vector<8x1xf32> to vector<8x8xf32>
    %43 = arith.mulf %37, %42 : vector<8x8xf32>
    %c0_21 = arith.constant 0 : index
    %c1 = arith.constant 1 : index
    %c0_22 = arith.constant 0 : index
    %c0_23 = arith.constant 0 : index
    %44 = vector.load %arg7[%c0_21, %c1, %c0_22, %c0_23] : memref<1x4x8x8xf32, #tpu.memory_space<vmem>>, vector<1x1x8x8xf32>
    %45 = vector.shape_cast %44 : vector<1x1x8x8xf32> to vector<8x8xf32>
    %46 = vector.shape_cast %43 : vector<8x8xf32> to vector<1x1x8x8xf32>
    tpu.vector_store %arg7[%c0_21, %c1, %c0_22, %c0_23], %46 {strides = array<i32>} : memref<1x4x8x8xf32, #tpu.memory_space<vmem>>, vector<1x1x8x8xf32>,
    %cst_24 = arith.constant dense<0.000000e+00> : vector<8x8xf32>
    %47 = tpu.matmul %43, %31, %cst_24 {dimension_numbers = #tpu.dot_dimension_numbers<[1], [0], [0], [1], [0, 0, 1, 1], [], []>} : vector<8x8xf32>, vector<8x8xf32>, vector<8x8xf32> -> vector<8x8xf32>
    %c0_25 = arith.constant 0 : index
    %c8 = arith.constant 8 : index
    %48 = vector.load %arg8[%c0_25, %c8] : memref<8x32xf32, #tpu.memory_space<vmem>>, vector<8x8xf32>
    tpu.vector_store %arg8[%c0_25, %c8], %47 {strides = array<i32>} : memref<8x32xf32, #tpu.memory_space<vmem>>, vector<8x8xf32>,
    %49 = vector.extract_strided_slice %8 {offsets = [0, 16], sizes = [8, 8], strides = [1, 1]} : vector<8x96xf32> to vector<8x8xf32>
    %50 = vector.extract_strided_slice %8 {offsets = [0, 48], sizes = [8, 8], strides = [1, 1]} : vector<8x96xf32> to vector<8x8xf32>
    %51 = vector.extract_strided_slice %8 {offsets = [0, 80], sizes = [8, 8], strides = [1, 1]} : vector<8x96xf32> to vector<8x8xf32>
    %cst_26 = arith.constant dense<0.000000e+00> : vector<8x8xf32>
    %52 = tpu.matmul %49, %50, %cst_26 {dimension_numbers = #tpu.dot_dimension_numbers<[1], [1], [0], [0], [0, 0, 1, 0], [], []>} : vector<8x8xf32>, vector<8x8xf32>, vector<8x8xf32> -> vector<8x8xf32>
    %cst_27 = arith.constant dense<0xFF800000> : vector<8xf32>
    %53 = vector.multi_reduction <maximumf>, %52, %cst_27 [1] : vector<8x8xf32> to vector<8xf32>
    %54 = vector.shape_cast %53 : vector<8xf32> to vector<8x1xf32>
    %55 = vector.broadcast %54 : vector<8x1xf32> to vector<8x8xf32>
    %56 = arith.subf %52, %55 : vector<8x8xf32>
    %57 = math.exp %56 : vector<8x8xf32>
    %cst_28 = arith.constant dense<0.000000e+00> : vector<8xf32>
    %58 = vector.multi_reduction <add>, %57, %cst_28 [1] : vector<8x8xf32> to vector<8xf32>
    %59 = vector.shape_cast %58 : vector<8xf32> to vector<8x1xf32>
    %cst_29 = arith.constant 1.000000e+00 : f32
    %60 = vector.broadcast %cst_29 : f32 to vector<8x1xf32>
    %61 = arith.divf %60, %59 : vector<8x1xf32>
    %62 = vector.broadcast %61 : vector<8x1xf32> to vector<8x8xf32>
    %63 = arith.mulf %57, %62 : vector<8x8xf32>
    %c0_30 = arith.constant 0 : index
    %c2 = arith.constant 2 : index
    %c0_31 = arith.constant 0 : index
    %c0_32 = arith.constant 0 : index
    %64 = vector.load %arg7[%c0_30, %c2, %c0_31, %c0_32] : memref<1x4x8x8xf32, #tpu.memory_space<vmem>>, vector<1x1x8x8xf32>
    %65 = vector.shape_cast %64 : vector<1x1x8x8xf32> to vector<8x8xf32>
    %66 = vector.shape_cast %63 : vector<8x8xf32> to vector<1x1x8x8xf32>
    tpu.vector_store %arg7[%c0_30, %c2, %c0_31, %c0_32], %66 {strides = array<i32>} : memref<1x4x8x8xf32, #tpu.memory_space<vmem>>, vector<1x1x8x8xf32>,
    %cst_33 = arith.constant dense<0.000000e+00> : vector<8x8xf32>
    %67 = tpu.matmul %63, %51, %cst_33 {dimension_numbers = #tpu.dot_dimension_numbers<[1], [0], [0], [1], [0, 0, 1, 1], [], []>} : vector<8x8xf32>, vector<8x8xf32>, vector<8x8xf32> -> vector<8x8xf32>
    %c0_34 = arith.constant 0 : index
    %c16 = arith.constant 16 : index
    %68 = vector.load %arg8[%c0_34, %c16] : memref<8x32xf32, #tpu.memory_space<vmem>>, vector<8x8xf32>
    tpu.vector_store %arg8[%c0_34, %c16], %67 {strides = array<i32>} : memref<8x32xf32, #tpu.memory_space<vmem>>, vector<8x8xf32>,
    %69 = vector.extract_strided_slice %8 {offsets = [0, 24], sizes = [8, 8], strides = [1, 1]} : vector<8x96xf32> to vector<8x8xf32>
    %70 = vector.extract_strided_slice %8 {offsets = [0, 56], sizes = [8, 8], strides = [1, 1]} : vector<8x96xf32> to vector<8x8xf32>
    %71 = vector.extract_strided_slice %8 {offsets = [0, 88], sizes = [8, 8], strides = [1, 1]} : vector<8x96xf32> to vector<8x8xf32>
    %cst_35 = arith.constant dense<0.000000e+00> : vector<8x8xf32>
    %72 = tpu.matmul %69, %70, %cst_35 {dimension_numbers = #tpu.dot_dimension_numbers<[1], [1], [0], [0], [0, 0, 1, 0], [], []>} : vector<8x8xf32>, vector<8x8xf32>, vector<8x8xf32> -> vector<8x8xf32>
    %cst_36 = arith.constant dense<0xFF800000> : vector<8xf32>
    %73 = vector.multi_reduction <maximumf>, %72, %cst_36 [1] : vector<8x8xf32> to vector<8xf32>
    %74 = vector.shape_cast %73 : vector<8xf32> to vector<8x1xf32>
    %75 = vector.broadcast %74 : vector<8x1xf32> to vector<8x8xf32>
    %76 = arith.subf %72, %75 : vector<8x8xf32>
    %77 = math.exp %76 : vector<8x8xf32>
    %cst_37 = arith.constant dense<0.000000e+00> : vector<8xf32>
    %78 = vector.multi_reduction <add>, %77, %cst_37 [1] : vector<8x8xf32> to vector<8xf32>
    %79 = vector.shape_cast %78 : vector<8xf32> to vector<8x1xf32>
    %cst_38 = arith.constant 1.000000e+00 : f32
    %80 = vector.broadcast %cst_38 : f32 to vector<8x1xf32>
    %81 = arith.divf %80, %79 : vector<8x1xf32>
    %82 = vector.broadcast %81 : vector<8x1xf32> to vector<8x8xf32>
    %83 = arith.mulf %77, %82 : vector<8x8xf32>
    %c0_39 = arith.constant 0 : index
    %c3 = arith.constant 3 : index
    %c0_40 = arith.constant 0 : index
    %c0_41 = arith.constant 0 : index
    %84 = vector.load %arg7[%c0_39, %c3, %c0_40, %c0_41] : memref<1x4x8x8xf32, #tpu.memory_space<vmem>>, vector<1x1x8x8xf32>
    %85 = vector.shape_cast %84 : vector<1x1x8x8xf32> to vector<8x8xf32>
    %86 = vector.shape_cast %83 : vector<8x8xf32> to vector<1x1x8x8xf32>
    tpu.vector_store %arg7[%c0_39, %c3, %c0_40, %c0_41], %86 {strides = array<i32>} : memref<1x4x8x8xf32, #tpu.memory_space<vmem>>, vector<1x1x8x8xf32>,
    %cst_42 = arith.constant dense<0.000000e+00> : vector<8x8xf32>
    %87 = tpu.matmul %83, %71, %cst_42 {dimension_numbers = #tpu.dot_dimension_numbers<[1], [0], [0], [1], [0, 0, 1, 1], [], []>} : vector<8x8xf32>, vector<8x8xf32>, vector<8x8xf32> -> vector<8x8xf32>
    %c0_43 = arith.constant 0 : index
    %c24 = arith.constant 24 : index
    %88 = vector.load %arg8[%c0_43, %c24] : memref<8x32xf32, #tpu.memory_space<vmem>>, vector<8x8xf32>
    tpu.vector_store %arg8[%c0_43, %c24], %87 {strides = array<i32>} : memref<8x32xf32, #tpu.memory_space<vmem>>, vector<8x8xf32>,
    %c0_44 = arith.constant 0 : index
    %c0_45 = arith.constant 0 : index
    %89 = vector.load %arg8[%c0_44, %c0_45] : memref<8x32xf32, #tpu.memory_space<vmem>>, vector<8x32xf32>
    %c0_46 = arith.constant 0 : index
    %c0_47 = arith.constant 0 : index
    %90 = vector.load %arg4[%c0_46, %c0_47] : memref<32x32xf32, #tpu.memory_space<vmem>>, vector<32x32xf32>
    %cst_48 = arith.constant dense<0.000000e+00> : vector<8x32xf32>
    %91 = tpu.matmul %89, %90, %cst_48 {dimension_numbers = #tpu.dot_dimension_numbers<[1], [0], [0], [1], [0, 0, 1, 1], [], []>} : vector<8x32xf32>, vector<32x32xf32>, vector<8x32xf32> -> vector<8x32xf32>
    %c0_49 = arith.constant 0 : index
    %c0_50 = arith.constant 0 : index
    %92 = vector.load %arg5[%c0_49, %c0_50] : memref<1x32xf32, #tpu.memory_space<vmem>>, vector<1x32xf32>
    %93 = vector.shape_cast %92 : vector<1x32xf32> to vector<32xf32>
    %94 = vector.shape_cast %93 : vector<32xf32> to vector<1x32xf32>
    %95 = vector.broadcast %94 : vector<1x32xf32> to vector<8x32xf32>
    %96 = arith.addf %91, %95 : vector<8x32xf32>
    %c0_51 = arith.constant 0 : index
    %c0_52 = arith.constant 0 : index
    %c0_53 = arith.constant 0 : index
    %97 = vector.load %arg6[%c0_51, %c0_52, %c0_53] : memref<1x8x32xf32, #tpu.memory_space<vmem>>, vector<1x8x32xf32>
    %98 = vector.shape_cast %97 : vector<1x8x32xf32> to vector<8x32xf32>
    %99 = vector.shape_cast %96 : vector<8x32xf32> to vector<1x8x32xf32>
    tpu.vector_store %arg6[%c0_51, %c0_52, %c0_53], %99 {strides = array<i32>} : memref<1x8x32xf32, #tpu.memory_space<vmem>>, vector<1x8x32xf32>,
    return
  }
  func.func @transform_0(%arg0: i32) -> (i32, i32, i32) {
    %c0_i32 = arith.constant 0 : i32
    %c0_i32_0 = arith.constant 0 : i32
    %c0_i32_1 = arith.constant 0 : i32
    return %arg0, %c0_i32, %c0_i32_0 : i32, i32, i32
  }
  func.func @transform_1(%arg0: i32) -> (i32, i32) {
    %c0_i32 = arith.constant 0 : i32
    %c0_i32_0 = arith.constant 0 : i32
    %c0_i32_1 = arith.constant 0 : i32
    return %c0_i32, %c0_i32_0 : i32, i32
  }
  func.func @transform_2(%arg0: i32) -> (i32, i32) {
    %c0_i32 = arith.constant 0 : i32
    %c0_i32_0 = arith.constant 0 : i32
    %c0_i32_1 = arith.constant 0 : i32
    return %c0_i32, %c0_i32_0 : i32, i32
  }
  func.func @transform_3(%arg0: i32) -> (i32, i32) {
    %c0_i32 = arith.constant 0 : i32
    %c0_i32_0 = arith.constant 0 : i32
    %c0_i32_1 = arith.constant 0 : i32
    return %c0_i32, %c0_i32_0 : i32, i32
  }
  func.func @transform_4(%arg0: i32) -> (i32, i32) {
    %c0_i32 = arith.constant 0 : i32
    %c0_i32_0 = arith.constant 0 : i32
    %c0_i32_1 = arith.constant 0 : i32
    return %c0_i32, %c0_i32_0 : i32, i32
  }
  func.func @transform_5(%arg0: i32) -> (i32, i32, i32) {
    %c0_i32 = arith.constant 0 : i32
    %c0_i32_0 = arith.constant 0 : i32
    %c0_i32_1 = arith.constant 0 : i32
    return %arg0, %c0_i32, %c0_i32_0 : i32, i32, i32
  }
  func.func @transform_6(%arg0: i32) -> (i32, i32, i32, i32) {
    %c0_i32 = arith.constant 0 : i32
    %c0_i32_0 = arith.constant 0 : i32
    %c0_i32_1 = arith.constant 0 : i32
    %c0_i32_2 = arith.constant 0 : i32
    return %arg0, %c0_i32, %c0_i32_0, %c0_i32_1 : i32, i32, i32, i32
  }
}

</mosaic_0001>

<llo_original>
// kernel: tpu_custom_call.1
$region0: #{tpu_custom_call.1}
  #allocation0 [shape = 'u32[]', space=smem, size = 0x4, offset = 0x4, fixed_abs, tag = 'smem constant byte address 0x4 - core index']
  #allocation1 [shape = 'u32[72,128]{1,0:T(1,128)}', space=vmem, size = 0x9000, scoped, tag = 'internal scratch']
  #allocation2 [shape = 'f32[8,32]{1,0:T(8,128)}', space=vmem, size = 0x1000, scoped, tag = 'scratch operand']
  %s0 = inlined_call_operand.hbm [shape: f32[2,8,32], index: 0, kind: input, shape index: {}]
  %s1 = inlined_call_operand.hbm [shape: f32[32,96], index: 1, kind: input, shape index: {}]
  %s2 = inlined_call_operand.vmem [shape: f32[1,96], index: 2, kind: input, shape index: {}]
  %s3 = inlined_call_operand.hbm [shape: f32[32,32], index: 3, kind: input, shape index: {}]
  %s4 = inlined_call_operand.vmem [shape: f32[1,32], index: 4, kind: input, shape index: {}]
  %s5 = inlined_call_operand.hbm [shape: f32[2,8,32], index: 5, kind: output, shape index: {0}]
  %s6 = inlined_call_operand.hbm [shape: f32[2,4,8,8], index: 6, kind: output, shape index: {1}]
  %7 = xla_tuple %s5, %s6
  %s8 = sld [smem:[#allocation0]]
  $region73: #{tpu_custom_call.1} parent=0
    _
  %s10 = ssub.s32 1, %s8
  %s11 = scalar_select 0, %s10, %s8
  $region1: #{tpu_custom_call.1} parent=0
    #allocation3 [shape = 'u8[8192]{0}', space=vmem, size = 0x2000, scoped, tag = 'input window, operand 0']
    #allocation4 [shape = 's32[2]{0}', space=sflag, size = 0x8, scoped, tag = 'scoped memory for tpu_custom_call.1']
    #allocation5 [shape = 's32[2]{0}', space=sflag, size = 0x8, scoped, tag = 'scoped memory for tpu_custom_call.1']
    #allocation6 [shape = 'u8[16384]{0}', space=vmem, size = 0x4000, scoped, tag = 'input window, operand 1, single buffered']
    #allocation7 [shape = 's32[1]{0}', space=sflag, size = 0x4, scoped, tag = 'scoped memory for tpu_custom_call.1']
    #allocation8 [shape = 'u8[16384]{0}', space=vmem, size = 0x4000, scoped, tag = 'input window, operand 3, single buffered']
    #allocation9 [shape = 'u8[8192]{0}', space=vmem, size = 0x2000, scoped, tag = 'output window, operand 0']
    #allocation10 [shape = 'u8[32768]{0}', space=vmem, size = 0x8000, scoped, tag = 'output window, operand 1']
    #allocation11 [shape = 's32[2]{0}', space=sflag, size = 0x8, scoped, tag = 'scoped memory for tpu_custom_call.1']
    %12 = vsyncpa [#allocation4], 0
    %s13 = scalar_lea.sflag [#allocation4], 1
    %14 = vsyncpa %s13, 0
    %15 = vsyncpa [#allocation7], 0
    %16 = vsyncpa [#allocation5], 0
    %s17 = scalar_lea.sflag [#allocation5], 1
    %18 = vsyncpa %s17, 0
    %19 = vsyncpa [#allocation11], 0
    %s20 = scalar_lea.sflag [#allocation11], 1
    %21 = vsyncpa %s20, 0
    loop: start=0, step=1, limit=4
    $region2: #{tpu_custom_call.1} parent=1 // loop_pre_header
      _
    $region3: #{tpu_custom_call.1} parent=1 // loop_header
      %s23 = sphi 0, %s27
      %p24 = scmp.ge.s32.totalorder %s23, 4
      %s33 = sphi 0, %s35
      %s36 = sphi 0, %s33
      %s37 = sphi 0, %s36
      %s53 = sphi 0, %s37
      %s57 = sphi 0, %s57
      %s59 = sphi 0, %s57
      %s60 = sphi 0, %s59
      %s74 = sphi 0, %s60
      %s78 = sphi 0, %s78
      %s80 = sphi 0, %s78
      %s81 = sphi 0, %s80
      %s95 = sphi 0, %s81
      %s99 = sphi 0, %s99
      %s101 = sphi 0, %s99
      %s102 = sphi 0, %s101
      %s116 = sphi 0, %s102
      %s120 = sphi 0, %s120
      %s122 = sphi 0, %s120
      %s123 = sphi 0, %s122
      %s137 = sphi 0, %s123
      %s143 = sphi 0, %s145
      %s146 = sphi 0, %s143
      %s147 = sphi 0, %s146
      %s163 = sphi 0, %s147
      %s169 = sphi 0, %s171
      %s172 = sphi 0, %s169
      %s173 = sphi 0, %s172
      %s189 = sphi 0, %s173
    $region4: #{tpu_custom_call.1} parent=1 // loop_header_branch
      %26 = sbr.rel (%p24) target = $region8
    $region5: #{tpu_custom_call.1} parent=1 // loop_body
      %s28 = ssub.s32 %s23, 1
      %s29 = ssub.s32 %s23, 2
      %s30 = sadd.s32 %s23, 1
      %s31 = ssub.s32 %s23, %s30
      %p32 = scmp.eq.s32.totalorder %s31, 0
      %s34 = sadd.s32 %s33, 1
      %s35 = scalar_select %p32, %s33, %s34
      %p38 = pneg %p32
      %p39 = scmp.eq.s32.totalorder %s23, 1
      %p40 = por %p38, %p39
      %p41 = scmp.ne.s32.totalorder %s33, %s36
      %p42 = scmp.eq.s32.totalorder %s23, 0
      %p43 = por %p41, %p42
      %p44 = scmp.ne.s32.totalorder %s33, %s36
      %p45 = scmp.eq.s32.totalorder %s28, 1
      %p46 = por %p44, %p45
      %p47 = scmp.ne.s32.totalorder %s36, %s37
      %p48 = scmp.eq.s32.totalorder %s28, 0
      %p49 = por %p47, %p48
      %p50 = scmp.ne.s32.totalorder %s36, %s37
      %p51 = scmp.eq.s32.totalorder %s29, 1
      %p52 = por %p50, %p51
      %p54 = scmp.ne.s32.totalorder %s37, %s53
      %p55 = scmp.eq.s32.totalorder %s29, 0
      %p56 = por %p54, %p55
      %s58 = sadd.s32 %s57, 1
      %p61 = scmp.eq.s32.totalorder %s23, 1
      %p62 = scmp.ne.s32.totalorder %s57, %s59
      %p63 = scmp.eq.s32.totalorder %s23, 0
      %p64 = por %p62, %p63
      %p65 = scmp.ne.s32.totalorder %s57, %s59
      %p66 = scmp.eq.s32.totalorder %s28, 1
      %p67 = por %p65, %p66
      %p68 = scmp.ne.s32.totalorder %s59, %s60
      %p69 = scmp.eq.s32.totalorder %s28, 0
      %p70 = por %p68, %p69
      %p71 = scmp.ne.s32.totalorder %s59, %s60
      %p72 = scmp.eq.s32.totalorder %s29, 1
      %p73 = por %p71, %p72
      %p75 = scmp.ne.s32.totalorder %s60, %s74
      %p76 = scmp.eq.s32.totalorder %s29, 0
      %p77 = por %p75, %p76
      %s79 = sadd.s32 %s78, 1
      %p82 = scmp.eq.s32.totalorder %s23, 1
      %p83 = scmp.ne.s32.totalorder %s78, %s80
      %p84 = scmp.eq.s32.totalorder %s23, 0
      %p85 = por %p83, %p84
      %p86 = scmp.ne.s32.totalorder %s78, %s80
      %p87 = scmp.eq.s32.totalorder %s28, 1
      %p88 = por %p86, %p87
      %p89 = scmp.ne.s32.totalorder %s80, %s81
      %p90 = scmp.eq.s32.totalorder %s28, 0
      %p91 = por %p89, %p90
      %p92 = scmp.ne.s32.totalorder %s80, %s81
      %p93 = scmp.eq.s32.totalorder %s29, 1
      %p94 = por %p92, %p93
      %p96 = scmp.ne.s32.totalorder %s81, %s95
      %p97 = scmp.eq.s32.totalorder %s29, 0
      %p98 = por %p96, %p97
      %s100 = sadd.s32 %s99, 1
      %p103 = scmp.eq.s32.totalorder %s23, 1
      %p104 = scmp.ne.s32.totalorder %s99, %s101
      %p105 = scmp.eq.s32.totalorder %s23, 0
      %p106 = por %p104, %p105
      %p107 = scmp.ne.s32.totalorder %s99, %s101
      %p108 = scmp.eq.s32.totalorder %s28, 1
      %p109 = por %p107, %p108
      %p110 = scmp.ne.s32.totalorder %s101, %s102
      %p111 = scmp.eq.s32.totalorder %s28, 0
      %p112 = por %p110, %p111
      %p113 = scmp.ne.s32.totalorder %s101, %s102
      %p114 = scmp.eq.s32.totalorder %s29, 1
      %p115 = por %p113, %p114
      %p117 = scmp.ne.s32.totalorder %s102, %s116
      %p118 = scmp.eq.s32.totalorder %s29, 0
      %p119 = por %p117, %p118
      %s121 = sadd.s32 %s120, 1
      %p124 = scmp.eq.s32.totalorder %s23, 1
      %p125 = scmp.ne.s32.totalorder %s120, %s122
      %p126 = scmp.eq.s32.totalorder %s23, 0
      %p127 = por %p125, %p126
      %p128 = scmp.ne.s32.totalorder %s120, %s122
      %p129 = scmp.eq.s32.totalorder %s28, 1
      %p130 = por %p128, %p129
      %p131 = scmp.ne.s32.totalorder %s122, %s123
      %p132 = scmp.eq.s32.totalorder %s28, 0
      %p133 = por %p131, %p132
      %p134 = scmp.ne.s32.totalorder %s122, %s123
      %p135 = scmp.eq.s32.totalorder %s29, 1
      %p136 = por %p134, %p135
      %p138 = scmp.ne.s32.totalorder %s123, %s137
      %p139 = scmp.eq.s32.totalorder %s29, 0
      %p140 = por %p138, %p139
      %s141 = ssub.s32 %s23, %s30
      %p142 = scmp.eq.s32.totalorder %s141, 0
      %s144 = sadd.s32 %s143, 1
      %s145 = scalar_select %p142, %s143, %s144
      %p148 = pneg %p142
      %p149 = scmp.eq.s32.totalorder %s23, 1
      %p150 = por %p148, %p149
      %p151 = scmp.ne.s32.totalorder %s143, %s146
      %p152 = scmp.eq.s32.totalorder %s23, 0
      %p153 = por %p151, %p152
      %p154 = scmp.ne.s32.totalorder %s143, %s146
      %p155 = scmp.eq.s32.totalorder %s28, 1
      %p156 = por %p154, %p155
      %p157 = scmp.ne.s32.totalorder %s146, %s147
      %p158 = scmp.eq.s32.totalorder %s28, 0
      %p159 = por %p157, %p158
      %p160 = scmp.ne.s32.totalorder %s146, %s147
      %p161 = scmp.eq.s32.totalorder %s29, 1
      %p162 = por %p160, %p161
      %p164 = scmp.ne.s32.totalorder %s147, %s163
      %p165 = scmp.eq.s32.totalorder %s29, 0
      %p166 = por %p164, %p165
      %s167 = ssub.s32 %s23, %s30
      %p168 = scmp.eq.s32.totalorder %s167, 0
      %s170 = sadd.s32 %s169, 1
      %s171 = scalar_select %p168, %s169, %s170
      %p174 = pneg %p168
      %p175 = scmp.eq.s32.totalorder %s23, 1
      %p176 = por %p174, %p175
      %p177 = scmp.ne.s32.totalorder %s169, %s172
      %p178 = scmp.eq.s32.totalorder %s23, 0
      %p179 = por %p177, %p178
      %p180 = scmp.ne.s32.totalorder %s169, %s172
      %p181 = scmp.eq.s32.totalorder %s28, 1
      %p182 = por %p180, %p181
      %p183 = scmp.ne.s32.totalorder %s172, %s173
      %p184 = scmp.eq.s32.totalorder %s28, 0
      %p185 = por %p183, %p184
      %p186 = scmp.ne.s32.totalorder %s172, %s173
      %p187 = scmp.eq.s32.totalorder %s29, 1
      %p188 = por %p186, %p187
      %p190 = scmp.ne.s32.totalorder %s173, %s189
      %p191 = scmp.eq.s32.totalorder %s29, 0
      %p192 = por %p190, %p191
      %p193 = scmp.le.s32.totalorder 1, %s23
      %p194 = scmp.lt.s32.totalorder %s23, 3
      %p195 = pnand %p193, %p194
      %p196 = pneg %p195
      // Predicated region
      $region9: #{tpu_custom_call.1} parent=5 // pred_check
        _
      $region10: #{tpu_custom_call.1} parent=5 // pred_check_branch
        %198 = sbr.rel (%p195) target = $region12
      $region11: #{tpu_custom_call.1} parent=5 // pred_region
        %s199 = ssub.s32 %s23, 1
        // Predicated region
        $region13: #{tpu_custom_call.1} parent=11 // pred_check
          %p200 = pneg %p70
        $region14: #{tpu_custom_call.1} parent=11 // pred_check_branch
          %202 = sbr.rel (%p200) target = $region16
        $region15: #{tpu_custom_call.1} parent=11 // pred_region
          %204 = vsyncadd [#allocation7], 0
          %s205 = sshll.u32 %s1, 4
          %s206 = int_to_ptr.hbm [resolvable:$true] %s205
          %s207 = sshll.u32 [#allocation6], 4
          %s208 = int_to_ptr.vmem [resolvable:$true] %s207
          %213 = dma.hbm_to_vmem [thread:$0]  %s206, 512, %s208, [#allocation7], 128, 128, 8
        $region16: #{tpu_custom_call.1} parent=11 // pred_fallthru
          _
        // Predicated region
        $region17: #{tpu_custom_call.1} parent=11 // pred_check
          %p214 = pneg %p91
        $region18: #{tpu_custom_call.1} parent=11 // pred_check_branch
          %216 = sbr.rel (%p214) target = $region20
        $region19: #{tpu_custom_call.1} parent=11 // pred_region
          _
        $region20: #{tpu_custom_call.1} parent=11 // pred_fallthru
          _
        // Predicated region
        $region21: #{tpu_custom_call.1} parent=11 // pred_check
          %p217 = pneg %p112
        $region22: #{tpu_custom_call.1} parent=11 // pred_check_branch
          %219 = sbr.rel (%p217) target = $region24
        $region23: #{tpu_custom_call.1} parent=11 // pred_region
          %221 = vsyncadd [#allocation7], 0
          %s222 = sshll.u32 %s3, 4
          %s223 = int_to_ptr.hbm [resolvable:$true] %s222
          %s224 = sshll.u32 [#allocation8], 4
          %s225 = int_to_ptr.vmem [resolvable:$true] %s224
          %230 = dma.hbm_to_vmem [thread:$0]  %s223, 512, %s225, [#allocation7], 128, 128, 8
        $region24: #{tpu_custom_call.1} parent=11 // pred_fallthru
          _
        // Predicated region
        $region25: #{tpu_custom_call.1} parent=11 // pred_check
          %p231 = pneg %p133
        $region26: #{tpu_custom_call.1} parent=11 // pred_check_branch
          %233 = sbr.rel (%p231) target = $region28
        $region27: #{tpu_custom_call.1} parent=11 // pred_region
          _
        $region28: #{tpu_custom_call.1} parent=11 // pred_fallthru
          _
      $region12: #{tpu_custom_call.1} parent=5 // pred_fallthru
        _
      %p234 = scmp.lt.s32.totalorder %s23, 2
      // Predicated region
      $region29: #{tpu_custom_call.1} parent=5 // pred_check
        %p235 = pneg %p234
      $region30: #{tpu_custom_call.1} parent=5 // pred_check_branch
        %237 = sbr.rel (%p235) target = $region32
      $region31: #{tpu_custom_call.1} parent=5 // pred_region
        // Predicated region
        $region33: #{tpu_custom_call.1} parent=31 // pred_check
          %p238 = pneg %p43
        $region34: #{tpu_custom_call.1} parent=31 // pred_check_branch
          %240 = sbr.rel (%p238) target = $region36
        $region35: #{tpu_custom_call.1} parent=31 // pred_region
          %s241 = sand.u32 %s33, 1
          %s242 = scalar_lea.sflag [#allocation4], %s241
          %s243 = sand.u32 %s33, 1
          %s244 = smul.addr %s243, 8
          %s245 = scalar_lea.vmem [#allocation3], %s244
          %247 = vsyncadd %s242, 0
          %s248 = smul.addr %s23, 8
          %s249 = scalar_lea.hbm %s0, %s248
          %s251 = sshll.u32 %s249, 4
          %s252 = int_to_ptr.hbm [resolvable:$true] %s251
          %s253 = sshll.u32 %s245, 4
          %s254 = int_to_ptr.vmem [resolvable:$true] %s253
          %256 = dma.hbm_to_vmem [thread:$0]  %s252, 128, %s254, %s242
        $region36: #{tpu_custom_call.1} parent=31 // pred_fallthru
          _
      $region32: #{tpu_custom_call.1} parent=5 // pred_fallthru
        _
      %p257 = scmp.le.s32.totalorder 1, %s23
      %p258 = scmp.lt.s32.totalorder %s23, 3
      %p259 = pnand %p257, %p258
      %p260 = pneg %p259
      // Predicated region
      $region37: #{tpu_custom_call.1} parent=5 // pred_check
        _
      $region38: #{tpu_custom_call.1} parent=5 // pred_check_branch
        %262 = sbr.rel (%p259) target = $region40
      $region39: #{tpu_custom_call.1} parent=5 // pred_region
        %s263 = ssub.s32 %s23, 1
        %s264 = sand.u32 %s36, 1
        %s265 = scalar_lea.sflag [#allocation4], %s264
        %s266 = sand.u32 %s36, 1
        %s267 = smul.addr %s266, 8
        %s268 = scalar_lea.vmem [#allocation3], %s267
        // Predicated region
        $region41: #{tpu_custom_call.1} parent=39 // pred_check
          %p269 = pneg %p49
        $region42: #{tpu_custom_call.1} parent=39 // pred_check_branch
          %271 = sbr.rel (%p269) target = $region44
        $region43: #{tpu_custom_call.1} parent=39 // pred_region
          %273 = dma.done %s265, 128
        $region44: #{tpu_custom_call.1} parent=39 // pred_fallthru
          _
        // Predicated region
        $region45: #{tpu_custom_call.1} parent=39 // pred_check
          %p274 = pneg %p70
        $region46: #{tpu_custom_call.1} parent=39 // pred_check_branch
          %276 = sbr.rel (%p274) target = $region48
        $region47: #{tpu_custom_call.1} parent=39 // pred_region
          %278 = dma.done [#allocation7], 512
        $region48: #{tpu_custom_call.1} parent=39 // pred_fallthru
          _
        // Predicated region
        $region49: #{tpu_custom_call.1} parent=39 // pred_check
          %p279 = pneg %p112
        $region50: #{tpu_custom_call.1} parent=39 // pred_check_branch
          %281 = sbr.rel (%p279) target = $region52
        $region51: #{tpu_custom_call.1} parent=39 // pred_region
          %283 = dma.done [#allocation7], 512
        $region52: #{tpu_custom_call.1} parent=39 // pred_fallthru
          _
        %s284 = sand.u32 %s36, 1
        %s285 = scalar_lea.sflag [#allocation4], %s284
        %s286 = sand.u32 %s36, 1
        %s287 = smul.addr %s286, 8
        %s288 = scalar_lea.vmem [#allocation3], %s287
        %p289 = pneg %p49
        %p290 = pneg %p46
        %p291 = pneg %p70
        %p292 = pneg %p67
        %p293 = pneg %p91
        %p294 = pneg %p88
        %p295 = pneg %p112
        %p296 = pneg %p109
        %p297 = pneg %p133
        %p298 = pneg %p130
        %p299 = pneg %p159
        %p300 = pneg %p156
        %s301 = sand.u32 %s146, 1
        %s302 = scalar_lea.sflag [#allocation5], %s301
        %s303 = sand.u32 %s146, 1
        %s304 = smul.addr %s303, 8
        %s305 = scalar_lea.vmem [#allocation9], %s304
        %p306 = pneg %p185
        %p307 = pneg %p182
        %s308 = sand.u32 %s172, 1
        %s309 = scalar_lea.sflag [#allocation11], %s308
        %s310 = sand.u32 %s172, 1
        %s311 = smul.addr %s310, 32
        %s312 = scalar_lea.vmem [#allocation10], %s311
        %v313 = vld [vmem:[%s268] sm:$0xff]
        %v314 = vld [vmem:[#allocation6] sm:$0xff]
        %v315 = vld [vmem:[#allocation6 + $0x8] sm:$0xff]
        %v316 = vld [vmem:[#allocation6 + $0x10] sm:$0xff]
        %v317 = vld [vmem:[#allocation6 + $0x18] sm:$0xff]
        %v318 = vld [vmem:[%s2] sm:$0x1]
        %v320 = vperm.slane %v318, 0
        %vm322 = vcmask 261120
        %v324 = vsel %vm322, %v313, 0
        %326 = vmatpush.msra.mxu0 0.0
        %327 = vmatpush.msra.mxu0 0.0
        %328 = vmatpush.msra.mxu0 0.0
        %329 = vmatpush.msra.mxu0 0.0
        %330 = vmatpush.msra.mxu0 0.0
        %331 = vmatpush.msra.mxu0 0.0
        %332 = vmatpush.msra.mxu0 0.0
        %333 = vmatpush.msra.mxu0 0.0
        %334 = vmatpush.msra.mxu0 0.0
        %335 = vmatpush.msra.mxu0 0.0
        %336 = vmatpush.msra.mxu0 0.0
        %337 = vmatpush.msra.mxu0 0.0
        %338 = vmatpush.msra.mxu0 %v317
        %339 = vmatpush.msra.mxu0 %v316
        %340 = vmatpush.msra.mxu0 %v315
        %341 = vmatpush.msra.mxu0 %v314
        %342 = vmatmul.f32.gmra.mxu0 %v324
        %v343 = vpop.f32.mrf.mxu0
        %v344 = vadd.f32 %v320, %v343
        %345 = vdwg.mxu0
        %347 = vrot.lane.b32.xlu0 %v344, 96
        %v348 = vpop.permute.xlu0 %347
        %vm349 = vcmask 64512
        %v350 = vsel %vm349, %v344, 0
        %v352 = vsel %vm349, %v348, 0
        %354 = vmatpush.xpose.msra.mxu0 0.0
        %355 = vmatpush.xpose.msra.mxu0 0.0
        %356 = vmatpush.xpose.msra.mxu0 0.0
        %357 = vmatpush.xpose.msra.mxu0 0.0
        %358 = vmatpush.xpose.msra.mxu0 0.0
        %359 = vmatpush.xpose.msra.mxu0 0.0
        %360 = vmatpush.xpose.msra.mxu0 0.0
        %361 = vmatpush.xpose.msra.mxu0 0.0
        %362 = vmatpush.xpose.msra.mxu0 0.0
        %363 = vmatpush.xpose.msra.mxu0 0.0
        %364 = vmatpush.xpose.msra.mxu0 0.0
        %365 = vmatpush.xpose.msra.mxu0 0.0
        %366 = vmatpush.xpose.msra.mxu0 0.0
        %367 = vmatpush.xpose.msra.mxu0 0.0
        %368 = vmatpush.xpose.msra.mxu0 0.0
        %369 = vmatpush.xpose.msra.mxu0 %v352
        %370 = vmatmul.f32.gmra.mxu0 %v350
        %v371 = vpop.f32.mrf.mxu0
        %v372 = vadd.f32 0.0, %v371
        %373 = vdwg.mxu0
        %v374 = vsel %vm349, %v372, -inf
        %375 = vmax.xlane.f32.xlu0 %v374
        %v376 = vpop.xlane.xlu0 %375
        %v377 = vsub.f32 %v372, %v376
        %v378 = vmul.f32 %v377, 1.442695
        %v379 = vpow.pop %v378
        %v380 = vsel %vm349, %v379, 0.0
        %381 = vadd.xlane.f32.xlu0 %v380
        %v382 = vpop.xlane.xlu0 %381
        %v383 = vrcp.pop %v382
        %v384 = vmul.f32 %v382, %v383
        %v385 = vsub.f32 1.0, %v384
        %v386 = vmul.f32 %v383, %v385
        %v387 = vadd.f32 %v383, %v386
        %vm388 = vweird.f32 %v382
        %vm389 = vweird.f32 %v383
        %vm390 = vmor %vm388, %vm389
        %v391 = vsel %vm390, %v383, %v387
        %v392 = vand.u32 2147483647, %v382
        %vm393 = vcmp.eq.f32.partialorder %v392, 8.507059e+37
        %v394 = vand.u32 %v382, 2147483648
        %v395 = vor.u32 1.1754944e-38, %v394
        %v396 = vsel %vm393, %v395, %v391
        %v397 = vmul.f32 1.0, %v396
        %v398 = vmul.f32 %v379, %v397
        %399 = vst.msk [vmem:[%s312] sm:$0xff] %vm349, %v398
        %400 = vrot.lane.b32.xlu0 %v344, 64
        %v401 = vpop.permute.xlu0 %400
        %v404 = vsel %vm349, %v398, 0
        %406 = vmatpush.msra.mxu0 0.0
        %407 = vmatpush.msra.mxu0 0.0
        %408 = vmatpush.msra.mxu0 0.0
        %409 = vmatpush.msra.mxu0 0.0
        %410 = vmatpush.msra.mxu0 0.0
        %411 = vmatpush.msra.mxu0 0.0
        %412 = vmatpush.msra.mxu0 0.0
        %413 = vmatpush.msra.mxu0 0.0
        %414 = vmatpush.msra.mxu0 0.0
        %415 = vmatpush.msra.mxu0 0.0
        %416 = vmatpush.msra.mxu0 0.0
        %417 = vmatpush.msra.mxu0 0.0
        %418 = vmatpush.msra.mxu0 0.0
        %419 = vmatpush.msra.mxu0 0.0
        %420 = vmatpush.msra.mxu0 0.0
        %421 = vmatpush.msra.mxu0 %v401
        %422 = vmatmul.f32.gmra.mxu0 %v404
        %v423 = vpop.f32.mrf.mxu0
        %v424 = vadd.f32 0.0, %v423
        %425 = vdwg.mxu0
        %426 = vst.msk [vmem:[#allocation2] sm:$0xff] %vm349, %v424
        %427 = vrot.lane.b32.xlu0 %v344, 120
        %v428 = vpop.permute.xlu0 %427
        %429 = vrot.lane.b32.xlu0 %v344, 88
        %v430 = vpop.permute.xlu0 %429
        %v431 = vsel %vm349, %v428, 0
        %v433 = vsel %vm349, %v430, 0
        %435 = vmatpush.xpose.msra.mxu0 0.0
        %436 = vmatpush.xpose.msra.mxu0 0.0
        %437 = vmatpush.xpose.msra.mxu0 0.0
        %438 = vmatpush.xpose.msra.mxu0 0.0
        %439 = vmatpush.xpose.msra.mxu0 0.0
        %440 = vmatpush.xpose.msra.mxu0 0.0
        %441 = vmatpush.xpose.msra.mxu0 0.0
        %442 = vmatpush.xpose.msra.mxu0 0.0
        %443 = vmatpush.xpose.msra.mxu0 0.0
        %444 = vmatpush.xpose.msra.mxu0 0.0
        %445 = vmatpush.xpose.msra.mxu0 0.0
        %446 = vmatpush.xpose.msra.mxu0 0.0
        %447 = vmatpush.xpose.msra.mxu0 0.0
        %448 = vmatpush.xpose.msra.mxu0 0.0
        %449 = vmatpush.xpose.msra.mxu0 0.0
        %450 = vmatpush.xpose.msra.mxu0 %v433
        %451 = vmatmul.f32.gmra.mxu0 %v431
        %v452 = vpop.f32.mrf.mxu0
        %v453 = vadd.f32 0.0, %v452
        %454 = vdwg.mxu0
        %v455 = vsel %vm349, %v453, -inf
        %456 = vmax.xlane.f32.xlu0 %v455
        %v457 = vpop.xlane.xlu0 %456
        %v458 = vsub.f32 %v453, %v457
        %v459 = vmul.f32 %v458, 1.442695
        %v460 = vpow.pop %v459
        %v461 = vsel %vm349, %v460, 0.0
        %462 = vadd.xlane.f32.xlu0 %v461
        %v463 = vpop.xlane.xlu0 %462
        %v464 = vrcp.pop %v463
        %v465 = vmul.f32 %v463, %v464
        %v466 = vsub.f32 1.0, %v465
        %v467 = vmul.f32 %v464, %v466
        %v468 = vadd.f32 %v464, %v467
        %vm469 = vweird.f32 %v463
        %vm470 = vweird.f32 %v464
        %vm471 = vmor %vm469, %vm470
        %v472 = vsel %vm471, %v464, %v468
        %v473 = vand.u32 2147483647, %v463
        %vm474 = vcmp.eq.f32.partialorder %v473, 8.507059e+37
        %v475 = vand.u32 %v463, 2147483648
        %v476 = vor.u32 1.1754944e-38, %v475
        %v477 = vsel %vm474, %v476, %v472
        %v478 = vmul.f32 1.0, %v477
        %v479 = vmul.f32 %v460, %v478
        %s480 = scalar_lea.vmem %s312, 8 [#allocation10]
        %481 = vst.msk [vmem:[%s480] sm:$0xff] %vm349, %v479
        %482 = vrot.lane.b32.xlu0 %v344, 56
        %v483 = vpop.permute.xlu0 %482
        %v486 = vsel %vm349, %v479, 0
        %488 = vmatpush.msra.mxu0 0.0
        %489 = vmatpush.msra.mxu0 0.0
        %490 = vmatpush.msra.mxu0 0.0
        %491 = vmatpush.msra.mxu0 0.0
        %492 = vmatpush.msra.mxu0 0.0
        %493 = vmatpush.msra.mxu0 0.0
        %494 = vmatpush.msra.mxu0 0.0
        %495 = vmatpush.msra.mxu0 0.0
        %496 = vmatpush.msra.mxu0 0.0
        %497 = vmatpush.msra.mxu0 0.0
        %498 = vmatpush.msra.mxu0 0.0
        %499 = vmatpush.msra.mxu0 0.0
        %500 = vmatpush.msra.mxu0 0.0
        %501 = vmatpush.msra.mxu0 0.0
        %502 = vmatpush.msra.mxu0 0.0
        %503 = vmatpush.msra.mxu0 %v483
        %504 = vmatmul.f32.gmra.mxu0 %v486
        %v505 = vpop.f32.mrf.mxu0
        %v506 = vadd.f32 0.0, %v505
        %507 = vdwg.mxu0
        %509 = vrot.lane.b32.xlu0 %v506, 8
        %v510 = vpop.permute.xlu0 %509
        %vm512 = vcmask 130112
        %513 = vst.msk [vmem:[#allocation2] sm:$0xff] %vm512, %v510
        %514 = vrot.lane.b32.xlu0 %v344, 112
        %v515 = vpop.permute.xlu0 %514
        %516 = vrot.lane.b32.xlu0 %v344, 80
        %v517 = vpop.permute.xlu0 %516
        %v518 = vsel %vm349, %v515, 0
        %v520 = vsel %vm349, %v517, 0
        %522 = vmatpush.xpose.msra.mxu0 0.0
        %523 = vmatpush.xpose.msra.mxu0 0.0
        %524 = vmatpush.xpose.msra.mxu0 0.0
        %525 = vmatpush.xpose.msra.mxu0 0.0
        %526 = vmatpush.xpose.msra.mxu0 0.0
        %527 = vmatpush.xpose.msra.mxu0 0.0
        %528 = vmatpush.xpose.msra.mxu0 0.0
        %529 = vmatpush.xpose.msra.mxu0 0.0
        %530 = vmatpush.xpose.msra.mxu0 0.0
        %531 = vmatpush.xpose.msra.mxu0 0.0
        %532 = vmatpush.xpose.msra.mxu0 0.0
        %533 = vmatpush.xpose.msra.mxu0 0.0
        %534 = vmatpush.xpose.msra.mxu0 0.0
        %535 = vmatpush.xpose.msra.mxu0 0.0
        %536 = vmatpush.xpose.msra.mxu0 0.0
        %537 = vmatpush.xpose.msra.mxu0 %v520
        %538 = vmatmul.f32.gmra.mxu0 %v518
        %v539 = vpop.f32.mrf.mxu0
        %v540 = vadd.f32 0.0, %v539
        %541 = vdwg.mxu0
        %v542 = vsel %vm349, %v540, -inf
        %543 = vmax.xlane.f32.xlu0 %v542
        %v544 = vpop.xlane.xlu0 %543
        %v545 = vsub.f32 %v540, %v544
        %v546 = vmul.f32 %v545, 1.442695
        %v547 = vpow.pop %v546
        %v548 = vsel %vm349, %v547, 0.0
        %549 = vadd.xlane.f32.xlu0 %v548
        %v550 = vpop.xlane.xlu0 %549
        %v551 = vrcp.pop %v550
        %v552 = vmul.f32 %v550, %v551
        %v553 = vsub.f32 1.0, %v552
        %v554 = vmul.f32 %v551, %v553
        %v555 = vadd.f32 %v551, %v554
        %vm556 = vweird.f32 %v550
        %vm557 = vweird.f32 %v551
        %vm558 = vmor %vm556, %vm557
        %v559 = vsel %vm558, %v551, %v555
        %v560 = vand.u32 2147483647, %v550
        %vm561 = vcmp.eq.f32.partialorder %v560, 8.507059e+37
        %v562 = vand.u32 %v550, 2147483648
        %v563 = vor.u32 1.1754944e-38, %v562
        %v564 = vsel %vm561, %v563, %v559
        %v565 = vmul.f32 1.0, %v564
        %v566 = vmul.f32 %v547, %v565
        %s567 = scalar_lea.vmem %s312, 16 [#allocation10]
        %568 = vst.msk [vmem:[%s567] sm:$0xff] %vm349, %v566
        %569 = vrot.lane.b32.xlu0 %v344, 48
        %v570 = vpop.permute.xlu0 %569
        %v573 = vsel %vm349, %v566, 0
        %575 = vmatpush.msra.mxu0 0.0
        %576 = vmatpush.msra.mxu0 0.0
        %577 = vmatpush.msra.mxu0 0.0
        %578 = vmatpush.msra.mxu0 0.0
        %579 = vmatpush.msra.mxu0 0.0
        %580 = vmatpush.msra.mxu0 0.0
        %581 = vmatpush.msra.mxu0 0.0
        %582 = vmatpush.msra.mxu0 0.0
        %583 = vmatpush.msra.mxu0 0.0
        %584 = vmatpush.msra.mxu0 0.0
        %585 = vmatpush.msra.mxu0 0.0
        %586 = vmatpush.msra.mxu0 0.0
        %587 = vmatpush.msra.mxu0 0.0
        %588 = vmatpush.msra.mxu0 0.0
        %589 = vmatpush.msra.mxu0 0.0
        %590 = vmatpush.msra.mxu0 %v570
        %591 = vmatmul.f32.gmra.mxu0 %v573
        %v592 = vpop.f32.mrf.mxu0
        %v593 = vadd.f32 0.0, %v592
        %594 = vdwg.mxu0
        %596 = vrot.lane.b32.xlu0 %v593, 16
        %v597 = vpop.permute.xlu0 %596
        %vm599 = vcmask 195712
        %600 = vst.msk [vmem:[#allocation2] sm:$0xff] %vm599, %v597
        %601 = vrot.lane.b32.xlu0 %v344, 104
        %v602 = vpop.permute.xlu0 %601
        %603 = vrot.lane.b32.xlu0 %v344, 72
        %v604 = vpop.permute.xlu0 %603
        %v605 = vsel %vm349, %v602, 0
        %v607 = vsel %vm349, %v604, 0
        %609 = vmatpush.xpose.msra.mxu0 0.0
        %610 = vmatpush.xpose.msra.mxu0 0.0
        %611 = vmatpush.xpose.msra.mxu0 0.0
        %612 = vmatpush.xpose.msra.mxu0 0.0
        %613 = vmatpush.xpose.msra.mxu0 0.0
        %614 = vmatpush.xpose.msra.mxu0 0.0
        %615 = vmatpush.xpose.msra.mxu0 0.0
        %616 = vmatpush.xpose.msra.mxu0 0.0
        %617 = vmatpush.xpose.msra.mxu0 0.0
        %618 = vmatpush.xpose.msra.mxu0 0.0
        %619 = vmatpush.xpose.msra.mxu0 0.0
        %620 = vmatpush.xpose.msra.mxu0 0.0
        %621 = vmatpush.xpose.msra.mxu0 0.0
        %622 = vmatpush.xpose.msra.mxu0 0.0
        %623 = vmatpush.xpose.msra.mxu0 0.0
        %624 = vmatpush.xpose.msra.mxu0 %v607
        %625 = vmatmul.f32.gmra.mxu0 %v605
        %v626 = vpop.f32.mrf.mxu0
        %v627 = vadd.f32 0.0, %v626
        %628 = vdwg.mxu0
        %v629 = vsel %vm349, %v627, -inf
        %630 = vmax.xlane.f32.xlu0 %v629
        %v631 = vpop.xlane.xlu0 %630
        %v632 = vsub.f32 %v627, %v631
        %v633 = vmul.f32 %v632, 1.442695
        %v634 = vpow.pop %v633
        %v635 = vsel %vm349, %v634, 0.0
        %636 = vadd.xlane.f32.xlu0 %v635
        %v637 = vpop.xlane.xlu0 %636
        %v638 = vrcp.pop %v637
        %v639 = vmul.f32 %v637, %v638
        %v640 = vsub.f32 1.0, %v639
        %v641 = vmul.f32 %v638, %v640
        %v642 = vadd.f32 %v638, %v641
        %vm643 = vweird.f32 %v637
        %vm644 = vweird.f32 %v638
        %vm645 = vmor %vm643, %vm644
        %v646 = vsel %vm645, %v638, %v642
        %v647 = vand.u32 2147483647, %v637
        %vm648 = vcmp.eq.f32.partialorder %v647, 8.507059e+37
        %v649 = vand.u32 %v637, 2147483648
        %v650 = vor.u32 1.1754944e-38, %v649
        %v651 = vsel %vm648, %v650, %v646
        %v652 = vmul.f32 1.0, %v651
        %v653 = vmul.f32 %v634, %v652
        %s654 = scalar_lea.vmem %s312, 24 [#allocation10]
        %655 = vst.msk [vmem:[%s654] sm:$0xff] %vm349, %v653
        %656 = vrot.lane.b32.xlu0 %v344, 40
        %v657 = vpop.permute.xlu0 %656
        %v660 = vsel %vm349, %v653, 0
        %662 = vmatpush.msra.mxu0 0.0
        %663 = vmatpush.msra.mxu0 0.0
        %664 = vmatpush.msra.mxu0 0.0
        %665 = vmatpush.msra.mxu0 0.0
        %666 = vmatpush.msra.mxu0 0.0
        %667 = vmatpush.msra.mxu0 0.0
        %668 = vmatpush.msra.mxu0 0.0
        %669 = vmatpush.msra.mxu0 0.0
        %670 = vmatpush.msra.mxu0 0.0
        %671 = vmatpush.msra.mxu0 0.0
        %672 = vmatpush.msra.mxu0 0.0
        %673 = vmatpush.msra.mxu0 0.0
        %674 = vmatpush.msra.mxu0 0.0
        %675 = vmatpush.msra.mxu0 0.0
        %676 = vmatpush.msra.mxu0 0.0
        %677 = vmatpush.msra.mxu0 %v657
        %678 = vmatmul.f32.gmra.mxu0 %v660
        %v679 = vpop.f32.mrf.mxu0
        %v680 = vadd.f32 0.0, %v679
        %681 = vdwg.mxu0
        %683 = vrot.lane.b32.xlu0 %v680, 24
        %v684 = vpop.permute.xlu0 %683
        %vm686 = vcmask 261312
        %687 = vst.msk [vmem:[#allocation2] sm:$0xff] %vm686, %v684
        %v688 = vld [vmem:[#allocation2] sm:$0xff]
        %v689 = vld [vmem:[#allocation8] sm:$0xff]
        %v690 = vld [vmem:[#allocation8 + $0x8] sm:$0xff]
        %v691 = vld [vmem:[#allocation8 + $0x10] sm:$0xff]
        %v692 = vld [vmem:[#allocation8 + $0x18] sm:$0xff]
        %v693 = vld [vmem:[%s4] sm:$0x1]
        %v695 = vperm.slane %v693, 0
        %v698 = vsel %vm322, %v688, 0
        %700 = vmatpush.msra.mxu0 0.0
        %701 = vmatpush.msra.mxu0 0.0
        %702 = vmatpush.msra.mxu0 0.0
        %703 = vmatpush.msra.mxu0 0.0
        %704 = vmatpush.msra.mxu0 0.0
        %705 = vmatpush.msra.mxu0 0.0
        %706 = vmatpush.msra.mxu0 0.0
        %707 = vmatpush.msra.mxu0 0.0
        %708 = vmatpush.msra.mxu0 0.0
        %709 = vmatpush.msra.mxu0 0.0
        %710 = vmatpush.msra.mxu0 0.0
        %711 = vmatpush.msra.mxu0 0.0
        %712 = vmatpush.msra.mxu0 %v692
        %713 = vmatpush.msra.mxu0 %v691
        %714 = vmatpush.msra.mxu0 %v690
        %715 = vmatpush.msra.mxu0 %v689
        %716 = vmatmul.f32.gmra.mxu0 %v698
        %v717 = vpop.f32.mrf.mxu0
        %v718 = vadd.f32 %v695, %v717
        %719 = vdwg.mxu0
        %720 = vst.msk [vmem:[%s305] sm:$0xff] %vm322, %v718
        %s721 = sand.u32 %s146, 1
        %s722 = scalar_lea.sflag [#allocation5], %s721
        %s723 = sand.u32 %s146, 1
        %s724 = smul.addr %s723, 8
        %s725 = scalar_lea.vmem [#allocation9], %s724
        %s726 = sand.u32 %s172, 1
        %s727 = scalar_lea.sflag [#allocation11], %s726
        %s728 = sand.u32 %s172, 1
        %s729 = smul.addr %s728, 32
        %s730 = scalar_lea.vmem [#allocation10], %s729
        // Predicated region
        $region53: #{tpu_custom_call.1} parent=39 // pred_check
          %p731 = pneg %p156
        $region54: #{tpu_custom_call.1} parent=39 // pred_check_branch
          %733 = sbr.rel (%p731) target = $region56
        $region55: #{tpu_custom_call.1} parent=39 // pred_region
          %735 = vsyncadd %s722, 0
          %s736 = smul.addr %s28, 8
          %s737 = scalar_lea.hbm %s5, %s736
          %s739 = sshll.u32 %s725, 4
          %s740 = int_to_ptr.vmem [resolvable:$true] %s739
          %s741 = sshll.u32 %s737, 4
          %s742 = int_to_ptr.hbm [resolvable:$true] %s741
          %744 = dma.vmem_to_hbm [thread:$0]  %s740, 128, %s742, %s722
        $region56: #{tpu_custom_call.1} parent=39 // pred_fallthru
          _
        // Predicated region
        $region57: #{tpu_custom_call.1} parent=39 // pred_check
          %p745 = pneg %p182
        $region58: #{tpu_custom_call.1} parent=39 // pred_check_branch
          %747 = sbr.rel (%p745) target = $region60
        $region59: #{tpu_custom_call.1} parent=39 // pred_region
          %749 = vsyncadd %s727, 0
          %s750 = smul.addr %s28, 4
          %s751 = smul.addr %s750, 8
          %s752 = scalar_lea.hbm %s6, %s751
          %s753 = sshll.u32 %s730, 4
          %s754 = int_to_ptr.vmem [resolvable:$true] %s753
          %s755 = sshll.u32 %s752, 4
          %s756 = int_to_ptr.hbm [resolvable:$true] %s755
          %761 = dma.vmem_to_hbm [thread:$0]  %s754, 512, %s756, %s727, 128, 128, 8
        $region60: #{tpu_custom_call.1} parent=39 // pred_fallthru
          _
      $region40: #{tpu_custom_call.1} parent=5 // pred_fallthru
        _
      %p762 = scmp.le.s32.totalorder 2, %s23
      // Predicated region
      $region61: #{tpu_custom_call.1} parent=5 // pred_check
        %p763 = pneg %p762
      $region62: #{tpu_custom_call.1} parent=5 // pred_check_branch
        %765 = sbr.rel (%p763) target = $region64
      $region63: #{tpu_custom_call.1} parent=5 // pred_region
        %s766 = ssub.s32 %s23, 2
        // Predicated region
        $region65: #{tpu_custom_call.1} parent=63 // pred_check
          %p767 = pneg %p162
        $region66: #{tpu_custom_call.1} parent=63 // pred_check_branch
          %769 = sbr.rel (%p767) target = $region68
        $region67: #{tpu_custom_call.1} parent=63 // pred_region
          %s770 = sand.u32 %s147, 1
          %s771 = scalar_lea.sflag [#allocation5], %s770
          %s772 = sand.u32 %s147, 1
          %s773 = smul.addr %s772, 8
          %s774 = scalar_lea.vmem [#allocation9], %s773
          %776 = dma.done %s771, 128
        $region68: #{tpu_custom_call.1} parent=63 // pred_fallthru
          _
        // Predicated region
        $region69: #{tpu_custom_call.1} parent=63 // pred_check
          %p777 = pneg %p188
        $region70: #{tpu_custom_call.1} parent=63 // pred_check_branch
          %779 = sbr.rel (%p777) target = $region72
        $region71: #{tpu_custom_call.1} parent=63 // pred_region
          %s780 = sand.u32 %s173, 1
          %s781 = scalar_lea.sflag [#allocation11], %s780
          %s782 = sand.u32 %s173, 1
          %s783 = smul.addr %s782, 32
          %s784 = scalar_lea.vmem [#allocation10], %s783
          %786 = dma.done %s781, 512
        $region72: #{tpu_custom_call.1} parent=63 // pred_fallthru
          _
      $region64: #{tpu_custom_call.1} parent=5 // pred_fallthru
        _
    $region6: #{tpu_custom_call.1} parent=1 // loop_footer
      %s27 = sadd.s32 1, %s23
    $region7: #{tpu_custom_call.1} parent=1 // loop_footer_branch
      %22 = sbr.rel target = $region3
    $region8: #{tpu_custom_call.1} parent=1 // loop_exit
      _
    %787 = vsyncpa [#allocation4], 1
    %s788 = scalar_lea.sflag [#allocation4], 1
    %789 = vsyncpa %s788, 1
    %790 = vsyncpa [#allocation7], 1
    %791 = vsyncpa [#allocation5], 1
    %s792 = scalar_lea.sflag [#allocation5], 1
    %793 = vsyncpa %s792, 1
    %794 = vsyncpa [#allocation11], 1
    %s795 = scalar_lea.sflag [#allocation11], 1
    %796 = vsyncpa %s795, 1

// kernel: tpu_custom_call.1
$region0: #{tpu_custom_call.1}
  #allocation0 [shape = 'u32[]', space=smem, size = 0x4, offset = 0x4, fixed_abs, tag = 'smem constant byte address 0x4 - core index']
  #allocation1 [shape = 'u32[72,128]{1,0:T(1,128)}', space=vmem, size = 0x9000, scoped, tag = 'internal scratch']
  #allocation2 [shape = 'f32[8,32]{1,0:T(8,128)}', space=vmem, size = 0x1000, scoped, tag = 'scratch operand']
  %s0 = inlined_call_operand.hbm [shape: f32[2,8,32], index: 0, kind: input, shape index: {}]
  %s1 = inlined_call_operand.hbm [shape: f32[32,96], index: 1, kind: input, shape index: {}]
  %s2 = inlined_call_operand.vmem [shape: f32[1,96], index: 2, kind: input, shape index: {}]
  %s3 = inlined_call_operand.hbm [shape: f32[32,32], index: 3, kind: input, shape index: {}]
  %s4 = inlined_call_operand.vmem [shape: f32[1,32], index: 4, kind: input, shape index: {}]
  %s5 = inlined_call_operand.hbm [shape: f32[2,8,32], index: 5, kind: output, shape index: {0}]
  %s6 = inlined_call_operand.hbm [shape: f32[2,4,8,8], index: 6, kind: output, shape index: {1}]
  %7 = xla_tuple %s5, %s6
  %s8 = sld [smem:[#allocation0]]
  $region73: #{tpu_custom_call.1} parent=0
    _
  %s10 = ssub.s32 1, %s8
  %s11 = scalar_select 0, %s10, %s8
  $region1: #{tpu_custom_call.1} parent=0
    #allocation3 [shape = 'u8[8192]{0}', space=vmem, size = 0x2000, scoped, tag = 'input window, operand 0']
    #allocation4 [shape = 's32[2]{0}', space=sflag, size = 0x8, scoped, tag = 'scoped memory for tpu_custom_call.1']
    #allocation5 [shape = 's32[2]{0}', space=sflag, size = 0x8, scoped, tag = 'scoped memory for tpu_custom_call.1']
    #allocation6 [shape = 'u8[16384]{0}', space=vmem, size = 0x4000, scoped, tag = 'input window, operand 1, single buffered']
    #allocation7 [shape = 's32[1]{0}', space=sflag, size = 0x4, scoped, tag = 'scoped memory for tpu_custom_call.1']
    #allocation8 [shape = 'u8[16384]{0}', space=vmem, size = 0x4000, scoped, tag = 'input window, operand 3, single buffered']
    #allocation9 [shape = 'u8[8192]{0}', space=vmem, size = 0x2000, scoped, tag = 'output window, operand 0']
    #allocation10 [shape = 'u8[32768]{0}', space=vmem, size = 0x8000, scoped, tag = 'output window, operand 1']
    #allocation11 [shape = 's32[2]{0}', space=sflag, size = 0x8, scoped, tag = 'scoped memory for tpu_custom_call.1']
    %12 = vsyncpa [#allocation4], 0
    %s13 = scalar_lea.sflag [#allocation4], 1
    %14 = vsyncpa %s13, 0
    %15 = vsyncpa [#allocation7], 0
    %16 = vsyncpa [#allocation5], 0
    %s17 = scalar_lea.sflag [#allocation5], 1
    %18 = vsyncpa %s17, 0
    %19 = vsyncpa [#allocation11], 0
    %s20 = scalar_lea.sflag [#allocation11], 1
    %21 = vsyncpa %s20, 0
    loop: start=0, step=1, limit=4
    $region2: #{tpu_custom_call.1} parent=1 // loop_pre_header
      _
    $region3: #{tpu_custom_call.1} parent=1 // loop_header
      %s23 = sphi 0, %s27
      %p24 = scmp.ge.s32.totalorder %s23, 4
      %s33 = sphi 0, %s35
      %s36 = sphi 0, %s33
      %s37 = sphi 0, %s36
      %s53 = sphi 0, %s37
      %s57 = sphi 0, %s57
      %s59 = sphi 0, %s57
      %s60 = sphi 0, %s59
      %s74 = sphi 0, %s60
      %s78 = sphi 0, %s78
      %s80 = sphi 0, %s78
      %s81 = sphi 0, %s80
      %s95 = sphi 0, %s81
      %s99 = sphi 0, %s99
      %s101 = sphi 0, %s99
      %s102 = sphi 0, %s101
      %s116 = sphi 0, %s102
      %s120 = sphi 0, %s120
      %s122 = sphi 0, %s120
      %s123 = sphi 0, %s122
      %s137 = sphi 0, %s123
      %s143 = sphi 0, %s145
      %s146 = sphi 0, %s143
      %s147 = sphi 0, %s146
      %s163 = sphi 0, %s147
      %s169 = sphi 0, %s171
      %s172 = sphi 0, %s169
      %s173 = sphi 0, %s172
      %s189 = sphi 0, %s173
    $region4: #{tpu_custom_call.1} parent=1 // loop_header_branch
      %26 = sbr.rel (%p24) target = $region8
    $region5: #{tpu_custom_call.1} parent=1 // loop_body
      %s28 = ssub.s32 %s23, 1
      %s29 = ssub.s32 %s23, 2
      %s30 = sadd.s32 %s23, 1
      %s31 = ssub.s32 %s23, %s30
      %p32 = scmp.eq.s32.totalorder %s31, 0
      %s34 = sadd.s32 %s33, 1
      %s35 = scalar_select %p32, %s33, %s34
      %p38 = pneg %p32
      %p39 = scmp.eq.s32.totalorder %s23, 1
      %p40 = por %p38, %p39
      %p41 = scmp.ne.s32.totalorder %s33, %s36
      %p42 = scmp.eq.s32.totalorder %s23, 0
      %p43 = por %p41, %p42
      %p44 = scmp.ne.s32.totalorder %s33, %s36
      %p45 = scmp.eq.s32.totalorder %s28, 1
      %p46 = por %p44, %p45
      %p47 = scmp.ne.s32.totalorder %s36, %s37
      %p48 = scmp.eq.s32.totalorder %s28, 0
      %p49 = por %p47, %p48
      %p50 = scmp.ne.s32.totalorder %s36, %s37
      %p51 = scmp.eq.s32.totalorder %s29, 1
      %p52 = por %p50, %p51
      %p54 = scmp.ne.s32.totalorder %s37, %s53
      %p55 = scmp.eq.s32.totalorder %s29, 0
      %p56 = por %p54, %p55
      %s58 = sadd.s32 %s57, 1
      %p61 = scmp.eq.s32.totalorder %s23, 1
      %p62 = scmp.ne.s32.totalorder %s57, %s59
      %p63 = scmp.eq.s32.totalorder %s23, 0
      %p64 = por %p62, %p63
      %p65 = scmp.ne.s32.totalorder %s57, %s59
      %p66 = scmp.eq.s32.totalorder %s28, 1
      %p67 = por %p65, %p66
      %p68 = scmp.ne.s32.totalorder %s59, %s60
      %p69 = scmp.eq.s32.totalorder %s28, 0
      %p70 = por %p68, %p69
      %p71 = scmp.ne.s32.totalorder %s59, %s60
      %p72 = scmp.eq.s32.totalorder %s29, 1
      %p73 = por %p71, %p72
      %p75 = scmp.ne.s32.totalorder %s60, %s74
      %p76 = scmp.eq.s32.totalorder %s29, 0
      %p77 = por %p75, %p76
      %s79 = sadd.s32 %s78, 1
      %p82 = scmp.eq.s32.totalorder %s23, 1
      %p83 = scmp.ne.s32.totalorder %s78, %s80
      %p84 = scmp.eq.s32.totalorder %s23, 0
      %p85 = por %p83, %p84
      %p86 = scmp.ne.s32.totalorder %s78, %s80
      %p87 = scmp.eq.s32.totalorder %s28, 1
      %p88 = por %p86, %p87
      %p89 = scmp.ne.s32.totalorder %s80, %s81
      %p90 = scmp.eq.s32.totalorder %s28, 0
      %p91 = por %p89, %p90
      %p92 = scmp.ne.s32.totalorder %s80, %s81
      %p93 = scmp.eq.s32.totalorder %s29, 1
      %p94 = por %p92, %p93
      %p96 = scmp.ne.s32.totalorder %s81, %s95
      %p97 = scmp.eq.s32.totalorder %s29, 0
      %p98 = por %p96, %p97
      %s100 = sadd.s32 %s99, 1
      %p103 = scmp.eq.s32.totalorder %s23, 1
      %p104 = scmp.ne.s32.totalorder %s99, %s101
      %p105 = scmp.eq.s32.totalorder %s23, 0
      %p106 = por %p104, %p105
      %p107 = scmp.ne.s32.totalorder %s99, %s101
      %p108 = scmp.eq.s32.totalorder %s28, 1
      %p109 = por %p107, %p108
      %p110 = scmp.ne.s32.totalorder %s101, %s102
      %p111 = scmp.eq.s32.totalorder %s28, 0
      %p112 = por %p110, %p111
      %p113 = scmp.ne.s32.totalorder %s101, %s102
      %p114 = scmp.eq.s32.totalorder %s29, 1
      %p115 = por %p113, %p114
      %p117 = scmp.ne.s32.totalorder %s102, %s116
      %p118 = scmp.eq.s32.totalorder %s29, 0
      %p119 = por %p117, %p118
      %s121 = sadd.s32 %s120, 1
      %p124 = scmp.eq.s32.totalorder %s23, 1
      %p125 = scmp.ne.s32.totalorder %s120, %s122
      %p126 = scmp.eq.s32.totalorder %s23, 0
      %p127 = por %p125, %p126
      %p128 = scmp.ne.s32.totalorder %s120, %s122
      %p129 = scmp.eq.s32.totalorder %s28, 1
      %p130 = por %p128, %p129
      %p131 = scmp.ne.s32.totalorder %s122, %s123
      %p132 = scmp.eq.s32.totalorder %s28, 0
      %p133 = por %p131, %p132
      %p134 = scmp.ne.s32.totalorder %s122, %s123
      %p135 = scmp.eq.s32.totalorder %s29, 1
      %p136 = por %p134, %p135
      %p138 = scmp.ne.s32.totalorder %s123, %s137
      %p139 = scmp.eq.s32.totalorder %s29, 0
      %p140 = por %p138, %p139
      %s141 = ssub.s32 %s23, %s30
      %p142 = scmp.eq.s32.totalorder %s141, 0
      %s144 = sadd.s32 %s143, 1
      %s145 = scalar_select %p142, %s143, %s144
      %p148 = pneg %p142
      %p149 = scmp.eq.s32.totalorder %s23, 1
      %p150 = por %p148, %p149
      %p151 = scmp.ne.s32.totalorder %s143, %s146
      %p152 = scmp.eq.s32.totalorder %s23, 0
      %p153 = por %p151, %p152
      %p154 = scmp.ne.s32.totalorder %s143, %s146
      %p155 = scmp.eq.s32.totalorder %s28, 1
      %p156 = por %p154, %p155
      %p157 = scmp.ne.s32.totalorder %s146, %s147
      %p158 = scmp.eq.s32.totalorder %s28, 0
      %p159 = por %p157, %p158
      %p160 = scmp.ne.s32.totalorder %s146, %s147
      %p161 = scmp.eq.s32.totalorder %s29, 1
      %p162 = por %p160, %p161
      %p164 = scmp.ne.s32.totalorder %s147, %s163
      %p165 = scmp.eq.s32.totalorder %s29, 0
      %p166 = por %p164, %p165
      %s167 = ssub.s32 %s23, %s30
      %p168 = scmp.eq.s32.totalorder %s167, 0
      %s170 = sadd.s32 %s169, 1
      %s171 = scalar_select %p168, %s169, %s170
      %p174 = pneg %p168
      %p175 = scmp.eq.s32.totalorder %s23, 1
      %p176 = por %p174, %p175
      %p177 = scmp.ne.s32.totalorder %s169, %s172
      %p178 = scmp.eq.s32.totalorder %s23, 0
      %p179 = por %p177, %p178
      %p180 = scmp.ne.s32.totalorder %s169, %s172
      %p181 = scmp.eq.s32.totalorder %s28, 1
      %p182 = por %p180, %p181
      %p183 = scmp.ne.s32.totalorder %s172, %s173
      %p184 = scmp.eq.s32.totalorder %s28, 0
      %p185 = por %p183, %p184
      %p186 = scmp.ne.s32.totalorder %s172, %s173
      %p187 = scmp.eq.s32.totalorder %s29, 1
      %p188 = por %p186, %p187
      %p190 = scmp.ne.s32.totalorder %s173, %s189
      %p191 = scmp.eq.s32.totalorder %s29, 0
      %p192 = por %p190, %p191
      %p193 = scmp.le.s32.totalorder 1, %s23
      %p194 = scmp.lt.s32.totalorder %s23, 3
      %p195 = pnand %p193, %p194
      %p196 = pneg %p195
      // Predicated region
      $region9: #{tpu_custom_call.1} parent=5 // pred_check
        _
      $region10: #{tpu_custom_call.1} parent=5 // pred_check_branch
        %198 = sbr.rel (%p195) target = $region12
      $region11: #{tpu_custom_call.1} parent=5 // pred_region
        %s199 = ssub.s32 %s23, 1
        // Predicated region
        $region13: #{tpu_custom_call.1} parent=11 // pred_check
          %p200 = pneg %p70
        $region14: #{tpu_custom_call.1} parent=11 // pred_check_branch
          %202 = sbr.rel (%p200) target = $region16
        $region15: #{tpu_custom_call.1} parent=11 // pred_region
          %204 = vsyncadd [#allocation7], 0
          %s205 = sshll.u32 %s1, 4
          %s206 = int_to_ptr.hbm [resolvable:$true] %s205
          %s207 = sshll.u32 [#allocation6], 4
          %s208 = int_to_ptr.vmem [resolvable:$true] %s207
          %213 = dma.hbm_to_vmem [thread:$0]  %s206, 512, %s208, [#allocation7], 128, 128, 8
        $region16: #{tpu_custom_call.1} parent=11 // pred_fallthru
          _
        // Predicated region
        $region17: #{tpu_custom_call.1} parent=11 // pred_check
          %p214 = pneg %p91
        $region18: #{tpu_custom_call.1} parent=11 // pred_check_branch
          %216 = sbr.rel (%p214) target = $region20
        $region19: #{tpu_custom_call.1} parent=11 // pred_region
          _
        $region20: #{tpu_custom_call.1} parent=11 // pred_fallthru
          _
        // Predicated region
        $region21: #{tpu_custom_call.1} parent=11 // pred_check
          %p217 = pneg %p112
        $region22: #{tpu_custom_call.1} parent=11 // pred_check_branch
          %219 = sbr.rel (%p217) target = $region24
        $region23: #{tpu_custom_call.1} parent=11 // pred_region
          %221 = vsyncadd [#allocation7], 0
          %s222 = sshll.u32 %s3, 4
          %s223 = int_to_ptr.hbm [resolvable:$true] %s222
          %s224 = sshll.u32 [#allocation8], 4
          %s225 = int_to_ptr.vmem [resolvable:$true] %s224
          %230 = dma.hbm_to_vmem [thread:$0]  %s223, 512, %s225, [#allocation7], 128, 128, 8
        $region24: #{tpu_custom_call.1} parent=11 // pred_fallthru
          _
        // Predicated region
        $region25: #{tpu_custom_call.1} parent=11 // pred_check
          %p231 = pneg %p133
        $region26: #{tpu_custom_call.1} parent=11 // pred_check_branch
          %233 = sbr.rel (%p231) target = $region28
        $region27: #{tpu_custom_call.1} parent=11 // pred_region
          _
        $region28: #{tpu_custom_call.1} parent=11 // pred_fallthru
          _
      $region12: #{tpu_custom_call.1} parent=5 // pred_fallthru
        _
      %p234 = scmp.lt.s32.totalorder %s23, 2
      // Predicated region
      $region29: #{tpu_custom_call.1} parent=5 // pred_check
        %p235 = pneg %p234
      $region30: #{tpu_custom_call.1} parent=5 // pred_check_branch
        %237 = sbr.rel (%p235) target = $region32
      $region31: #{tpu_custom_call.1} parent=5 // pred_region
        // Predicated region
        $region33: #{tpu_custom_call.1} parent=31 // pred_check
          %p238 = pneg %p43
        $region34: #{tpu_custom_call.1} parent=31 // pred_check_branch
          %240 = sbr.rel (%p238) target = $region36
        $region35: #{tpu_custom_call.1} parent=31 // pred_region
          %s241 = sand.u32 %s33, 1
          %s242 = scalar_lea.sflag [#allocation4], %s241
          %s243 = sand.u32 %s33, 1
          %s244 = smul.addr %s243, 8
          %s245 = scalar_lea.vmem [#allocation3], %s244
          %247 = vsyncadd %s242, 0
          %s248 = smul.addr %s23, 8
          %s249 = scalar_lea.hbm %s0, %s248
          %s251 = sshll.u32 %s249, 4
          %s252 = int_to_ptr.hbm [resolvable:$true] %s251
          %s253 = sshll.u32 %s245, 4
          %s254 = int_to_ptr.vmem [resolvable:$true] %s253
          %256 = dma.hbm_to_vmem [thread:$0]  %s252, 128, %s254, %s242
        $region36: #{tpu_custom_call.1} parent=31 // pred_fallthru
          _
      $region32: #{tpu_custom_call.1} parent=5 // pred_fallthru
        _
      %p257 = scmp.le.s32.totalorder 1, %s23
      %p258 = scmp.lt.s32.totalorder %s23, 3
      %p259 = pnand %p257, %p258
      %p260 = pneg %p259
      // Predicated region
      $region37: #{tpu_custom_call.1} parent=5 // pred_check
        _
      $region38: #{tpu_custom_call.1} parent=5 // pred_check_branch
        %262 = sbr.rel (%p259) target = $region40
      $region39: #{tpu_custom_call.1} parent=5 // pred_region
        %s263 = ssub.s32 %s23, 1
        %s264 = sand.u32 %s36, 1
        %s265 = scalar_lea.sflag [#allocation4], %s264
        %s266 = sand.u32 %s36, 1
        %s267 = smul.addr %s266, 8
        %s268 = scalar_lea.vmem [#allocation3], %s267
        // Predicated region
        $region41: #{tpu_custom_call.1} parent=39 // pred_check
          %p269 = pneg %p49
        $region42: #{tpu_custom_call.1} parent=39 // pred_check_branch
          %271 = sbr.rel (%p269) target = $region44
        $region43: #{tpu_custom_call.1} parent=39 // pred_region
          %273 = dma.done %s265, 128
        $region44: #{tpu_custom_call.1} parent=39 // pred_fallthru
          _
        // Predicated region
        $region45: #{tpu_custom_call.1} parent=39 // pred_check
          %p274 = pneg %p70
        $region46: #{tpu_custom_call.1} parent=39 // pred_check_branch
          %276 = sbr.rel (%p274) target = $region48
        $region47: #{tpu_custom_call.1} parent=39 // pred_region
          %278 = dma.done [#allocation7], 512
        $region48: #{tpu_custom_call.1} parent=39 // pred_fallthru
          _
        // Predicated region
        $region49: #{tpu_custom_call.1} parent=39 // pred_check
          %p279 = pneg %p112
        $region50: #{tpu_custom_call.1} parent=39 // pred_check_branch
          %281 = sbr.rel (%p279) target = $region52
        $region51: #{tpu_custom_call.1} parent=39 // pred_region
          %283 = dma.done [#allocation7], 512
        $region52: #{tpu_custom_call.1} parent=39 // pred_fallthru
          _
        %s284 = sand.u32 %s36, 1
        %s285 = scalar_lea.sflag [#allocation4], %s284
        %s286 = sand.u32 %s36, 1
        %s287 = smul.addr %s286, 8
        %s288 = scalar_lea.vmem [#allocation3], %s287
        %p289 = pneg %p49
        %p290 = pneg %p46
        %p291 = pneg %p70
        %p292 = pneg %p67
        %p293 = pneg %p91
        %p294 = pneg %p88
        %p295 = pneg %p112
        %p296 = pneg %p109
        %p297 = pneg %p133
        %p298 = pneg %p130
        %p299 = pneg %p159
        %p300 = pneg %p156
        %s301 = sand.u32 %s146, 1
        %s302 = scalar_lea.sflag [#allocation5], %s301
        %s303 = sand.u32 %s146, 1
        %s304 = smul.addr %s303, 8
        %s305 = scalar_lea.vmem [#allocation9], %s304
        %p306 = pneg %p185
        %p307 = pneg %p182
        %s308 = sand.u32 %s172, 1
        %s309 = scalar_lea.sflag [#allocation11], %s308
        %s310 = sand.u32 %s172, 1
        %s311 = smul.addr %s310, 32
        %s312 = scalar_lea.vmem [#allocation10], %s311
        %v313 = vld [vmem:[%s268] sm:$0xff]
        %v314 = vld [vmem:[#allocation6] sm:$0xff]
        %v315 = vld [vmem:[#allocation6 + $0x8] sm:$0xff]
        %v316 = vld [vmem:[#allocation6 + $0x10] sm:$0xff]
        %v317 = vld [vmem:[#allocation6 + $0x18] sm:$0xff]
        %v318 = vld [vmem:[%s2] sm:$0x1]
        %v320 = vperm.slane %v318, 0
        %vm322 = vcmask 261120
        %v324 = vsel %vm322, %v313, 0
        %326 = vmatpush.msra.mxu0 0.0
        %327 = vmatpush.msra.mxu0 0.0
        %328 = vmatpush.msra.mxu0 0.0
        %329 = vmatpush.msra.mxu0 0.0
        %330 = vmatpush.msra.mxu0 0.0
        %331 = vmatpush.msra.mxu0 0.0
        %332 = vmatpush.msra.mxu0 0.0
        %333 = vmatpush.msra.mxu0 0.0
        %334 = vmatpush.msra.mxu0 0.0
        %335 = vmatpush.msra.mxu0 0.0
        %336 = vmatpush.msra.mxu0 0.0
        %337 = vmatpush.msra.mxu0 0.0
        %338 = vmatpush.msra.mxu0 %v317
        %339 = vmatpush.msra.mxu0 %v316
        %340 = vmatpush.msra.mxu0 %v315
        %341 = vmatpush.msra.mxu0 %v314
        %342 = vmatmul.f32.gmra.mxu0 %v324
        %v343 = vpop.f32.mrf.mxu0
        %v344 = vadd.f32 %v320, %v343
        %345 = vdwg.mxu0
        %347 = vrot.lane.b32.xlu0 %v344, 96
        %v348 = vpop.permute.xlu0 %347
        %vm349 = vcmask 64512
        %v350 = vsel %vm349, %v344, 0
        %v352 = vsel %vm349, %v348, 0
        %354 = vmatpush.xpose.msra.mxu0 0.0
        %355 = vmatpush.xpose.msra.mxu0 0.0
        %356 = vmatpush.xpose.msra.mxu0 0.0
        %357 = vmatpush.xpose.msra.mxu0 0.0
        %358 = vmatpush.xpose.msra.mxu0 0.0
        %359 = vmatpush.xpose.msra.mxu0 0.0
        %360 = vmatpush.xpose.msra.mxu0 0.0
        %361 = vmatpush.xpose.msra.mxu0 0.0
        %362 = vmatpush.xpose.msra.mxu0 0.0
        %363 = vmatpush.xpose.msra.mxu0 0.0
        %364 = vmatpush.xpose.msra.mxu0 0.0
        %365 = vmatpush.xpose.msra.mxu0 0.0
        %366 = vmatpush.xpose.msra.mxu0 0.0
        %367 = vmatpush.xpose.msra.mxu0 0.0
        %368 = vmatpush.xpose.msra.mxu0 0.0
        %369 = vmatpush.xpose.msra.mxu0 %v352
        %370 = vmatmul.f32.gmra.mxu0 %v350
        %v371 = vpop.f32.mrf.mxu0
        %v372 = vadd.f32 0.0, %v371
        %373 = vdwg.mxu0
        %v374 = vsel %vm349, %v372, -inf
        %375 = vmax.xlane.f32.xlu0 %v374
        %v376 = vpop.xlane.xlu0 %375
        %v377 = vsub.f32 %v372, %v376
        %v378 = vmul.f32 %v377, 1.442695
        %v379 = vpow.pop %v378
        %v380 = vsel %vm349, %v379, 0.0
        %381 = vadd.xlane.f32.xlu0 %v380
        %v382 = vpop.xlane.xlu0 %381
        %v383 = vrcp.pop %v382
        %v384 = vmul.f32 %v382, %v383
        %v385 = vsub.f32 1.0, %v384
        %v386 = vmul.f32 %v383, %v385
        %v387 = vadd.f32 %v383, %v386
        %vm388 = vweird.f32 %v382
        %vm389 = vweird.f32 %v383
        %vm390 = vmor %vm388, %vm389
        %v391 = vsel %vm390, %v383, %v387
        %v392 = vand.u32 2147483647, %v382
        %vm393 = vcmp.eq.f32.partialorder %v392, 8.507059e+37
        %v394 = vand.u32 %v382, 2147483648
        %v395 = vor.u32 1.1754944e-38, %v394
        %v396 = vsel %vm393, %v395, %v391
        %v397 = vmul.f32 1.0, %v396
        %v398 = vmul.f32 %v379, %v397
        %399 = vst.msk [vmem:[%s312] sm:$0xff] %vm349, %v398
        %400 = vrot.lane.b32.xlu0 %v344, 64
        %v401 = vpop.permute.xlu0 %400
        %v404 = vsel %vm349, %v398, 0
        %406 = vmatpush.msra.mxu0 0.0
        %407 = vmatpush.msra.mxu0 0.0
        %408 = vmatpush.msra.mxu0 0.0
        %409 = vmatpush.msra.mxu0 0.0
        %410 = vmatpush.msra.mxu0 0.0
        %411 = vmatpush.msra.mxu0 0.0
        %412 = vmatpush.msra.mxu0 0.0
        %413 = vmatpush.msra.mxu0 0.0
        %414 = vmatpush.msra.mxu0 0.0
        %415 = vmatpush.msra.mxu0 0.0
        %416 = vmatpush.msra.mxu0 0.0
        %417 = vmatpush.msra.mxu0 0.0
        %418 = vmatpush.msra.mxu0 0.0
        %419 = vmatpush.msra.mxu0 0.0
        %420 = vmatpush.msra.mxu0 0.0
        %421 = vmatpush.msra.mxu0 %v401
        %422 = vmatmul.f32.gmra.mxu0 %v404
        %v423 = vpop.f32.mrf.mxu0
        %v424 = vadd.f32 0.0, %v423
        %425 = vdwg.mxu0
        %426 = vst.msk [vmem:[#allocation2] sm:$0xff] %vm349, %v424
        %427 = vrot.lane.b32.xlu0 %v344, 120
        %v428 = vpop.permute.xlu0 %427
        %429 = vrot.lane.b32.xlu0 %v344, 88
        %v430 = vpop.permute.xlu0 %429
        %v431 = vsel %vm349, %v428, 0
        %v433 = vsel %vm349, %v430, 0
        %435 = vmatpush.xpose.msra.mxu0 0.0
        %436 = vmatpush.xpose.msra.mxu0 0.0
        %437 = vmatpush.xpose.msra.mxu0 0.0
        %438 = vmatpush.xpose.msra.mxu0 0.0
        %439 = vmatpush.xpose.msra.mxu0 0.0
        %440 = vmatpush.xpose.msra.mxu0 0.0
        %441 = vmatpush.xpose.msra.mxu0 0.0
        %442 = vmatpush.xpose.msra.mxu0 0.0
        %443 = vmatpush.xpose.msra.mxu0 0.0
        %444 = vmatpush.xpose.msra.mxu0 0.0
        %445 = vmatpush.xpose.msra.mxu0 0.0
        %446 = vmatpush.xpose.msra.mxu0 0.0
        %447 = vmatpush.xpose.msra.mxu0 0.0
        %448 = vmatpush.xpose.msra.mxu0 0.0
        %449 = vmatpush.xpose.msra.mxu0 0.0
        %450 = vmatpush.xpose.msra.mxu0 %v433
        %451 = vmatmul.f32.gmra.mxu0 %v431
        %v452 = vpop.f32.mrf.mxu0
        %v453 = vadd.f32 0.0, %v452
        %454 = vdwg.mxu0
        %v455 = vsel %vm349, %v453, -inf
        %456 = vmax.xlane.f32.xlu0 %v455
        %v457 = vpop.xlane.xlu0 %456
        %v458 = vsub.f32 %v453, %v457
        %v459 = vmul.f32 %v458, 1.442695
        %v460 = vpow.pop %v459
        %v461 = vsel %vm349, %v460, 0.0
        %462 = vadd.xlane.f32.xlu0 %v461
        %v463 = vpop.xlane.xlu0 %462
        %v464 = vrcp.pop %v463
        %v465 = vmul.f32 %v463, %v464
        %v466 = vsub.f32 1.0, %v465
        %v467 = vmul.f32 %v464, %v466
        %v468 = vadd.f32 %v464, %v467
        %vm469 = vweird.f32 %v463
        %vm470 = vweird.f32 %v464
        %vm471 = vmor %vm469, %vm470
        %v472 = vsel %vm471, %v464, %v468
        %v473 = vand.u32 2147483647, %v463
        %vm474 = vcmp.eq.f32.partialorder %v473, 8.507059e+37
        %v475 = vand.u32 %v463, 2147483648
        %v476 = vor.u32 1.1754944e-38, %v475
        %v477 = vsel %vm474, %v476, %v472
        %v478 = vmul.f32 1.0, %v477
        %v479 = vmul.f32 %v460, %v478
        %s480 = scalar_lea.vmem %s312, 8 [#allocation10]
        %481 = vst.msk [vmem:[%s480] sm:$0xff] %vm349, %v479
        %482 = vrot.lane.b32.xlu0 %v344, 56
        %v483 = vpop.permute.xlu0 %482
        %v486 = vsel %vm349, %v479, 0
        %488 = vmatpush.msra.mxu0 0.0
        %489 = vmatpush.msra.mxu0 0.0
        %490 = vmatpush.msra.mxu0 0.0
        %491 = vmatpush.msra.mxu0 0.0
        %492 = vmatpush.msra.mxu0 0.0
        %493 = vmatpush.msra.mxu0 0.0
        %494 = vmatpush.msra.mxu0 0.0
        %495 = vmatpush.msra.mxu0 0.0
        %496 = vmatpush.msra.mxu0 0.0
        %497 = vmatpush.msra.mxu0 0.0
        %498 = vmatpush.msra.mxu0 0.0
        %499 = vmatpush.msra.mxu0 0.0
        %500 = vmatpush.msra.mxu0 0.0
        %501 = vmatpush.msra.mxu0 0.0
        %502 = vmatpush.msra.mxu0 0.0
        %503 = vmatpush.msra.mxu0 %v483
        %504 = vmatmul.f32.gmra.mxu0 %v486
        %v505 = vpop.f32.mrf.mxu0
        %v506 = vadd.f32 0.0, %v505
        %507 = vdwg.mxu0
        %509 = vrot.lane.b32.xlu0 %v506, 8
        %v510 = vpop.permute.xlu0 %509
        %vm512 = vcmask 130112
        %513 = vst.msk [vmem:[#allocation2] sm:$0xff] %vm512, %v510
        %514 = vrot.lane.b32.xlu0 %v344, 112
        %v515 = vpop.permute.xlu0 %514
        %516 = vrot.lane.b32.xlu0 %v344, 80
        %v517 = vpop.permute.xlu0 %516
        %v518 = vsel %vm349, %v515, 0
        %v520 = vsel %vm349, %v517, 0
        %522 = vmatpush.xpose.msra.mxu0 0.0
        %523 = vmatpush.xpose.msra.mxu0 0.0
        %524 = vmatpush.xpose.msra.mxu0 0.0
        %525 = vmatpush.xpose.msra.mxu0 0.0
        %526 = vmatpush.xpose.msra.mxu0 0.0
        %527 = vmatpush.xpose.msra.mxu0 0.0
        %528 = vmatpush.xpose.msra.mxu0 0.0
        %529 = vmatpush.xpose.msra.mxu0 0.0
        %530 = vmatpush.xpose.msra.mxu0 0.0
        %531 = vmatpush.xpose.msra.mxu0 0.0
        %532 = vmatpush.xpose.msra.mxu0 0.0
        %533 = vmatpush.xpose.msra.mxu0 0.0
        %534 = vmatpush.xpose.msra.mxu0 0.0
        %535 = vmatpush.xpose.msra.mxu0 0.0
        %536 = vmatpush.xpose.msra.mxu0 0.0
        %537 = vmatpush.xpose.msra.mxu0 %v520
        %538 = vmatmul.f32.gmra.mxu0 %v518
        %v539 = vpop.f32.mrf.mxu0
        %v540 = vadd.f32 0.0, %v539
        %541 = vdwg.mxu0
        %v542 = vsel %vm349, %v540, -inf
        %543 = vmax.xlane.f32.xlu0 %v542
        %v544 = vpop.xlane.xlu0 %543
        %v545 = vsub.f32 %v540, %v544
        %v546 = vmul.f32 %v545, 1.442695
        %v547 = vpow.pop %v546
        %v548 = vsel %vm349, %v547, 0.0
        %549 = vadd.xlane.f32.xlu0 %v548
        %v550 = vpop.xlane.xlu0 %549
        %v551 = vrcp.pop %v550
        %v552 = vmul.f32 %v550, %v551
        %v553 = vsub.f32 1.0, %v552
        %v554 = vmul.f32 %v551, %v553
        %v555 = vadd.f32 %v551, %v554
        %vm556 = vweird.f32 %v550
        %vm557 = vweird.f32 %v551
        %vm558 = vmor %vm556, %vm557
        %v559 = vsel %vm558, %v551, %v555
        %v560 = vand.u32 2147483647, %v550
        %vm561 = vcmp.eq.f32.partialorder %v560, 8.507059e+37
        %v562 = vand.u32 %v550, 2147483648
        %v563 = vor.u32 1.1754944e-38, %v562
        %v564 = vsel %vm561, %v563, %v559
        %v565 = vmul.f32 1.0, %v564
        %v566 = vmul.f32 %v547, %v565
        %s567 = scalar_lea.vmem %s312, 16 [#allocation10]
        %568 = vst.msk [vmem:[%s567] sm:$0xff] %vm349, %v566
        %569 = vrot.lane.b32.xlu0 %v344, 48
        %v570 = vpop.permute.xlu0 %569
        %v573 = vsel %vm349, %v566, 0
        %575 = vmatpush.msra.mxu0 0.0
        %576 = vmatpush.msra.mxu0 0.0
        %577 = vmatpush.msra.mxu0 0.0
        %578 = vmatpush.msra.mxu0 0.0
        %579 = vmatpush.msra.mxu0 0.0
        %580 = vmatpush.msra.mxu0 0.0
        %581 = vmatpush.msra.mxu0 0.0
        %582 = vmatpush.msra.mxu0 0.0
        %583 = vmatpush.msra.mxu0 0.0
        %584 = vmatpush.msra.mxu0 0.0
        %585 = vmatpush.msra.mxu0 0.0
        %586 = vmatpush.msra.mxu0 0.0
        %587 = vmatpush.msra.mxu0 0.0
        %588 = vmatpush.msra.mxu0 0.0
        %589 = vmatpush.msra.mxu0 0.0
        %590 = vmatpush.msra.mxu0 %v570
        %591 = vmatmul.f32.gmra.mxu0 %v573
        %v592 = vpop.f32.mrf.mxu0
        %v593 = vadd.f32 0.0, %v592
        %594 = vdwg.mxu0
        %596 = vrot.lane.b32.xlu0 %v593, 16
        %v597 = vpop.permute.xlu0 %596
        %vm599 = vcmask 195712
        %600 = vst.msk [vmem:[#allocation2] sm:$0xff] %vm599, %v597
        %601 = vrot.lane.b32.xlu0 %v344, 104
        %v602 = vpop.permute.xlu0 %601
        %603 = vrot.lane.b32.xlu0 %v344, 72
        %v604 = vpop.permute.xlu0 %603
        %v605 = vsel %vm349, %v602, 0
        %v607 = vsel %vm349, %v604, 0
        %609 = vmatpush.xpose.msra.mxu0 0.0
        %610 = vmatpush.xpose.msra.mxu0 0.0
        %611 = vmatpush.xpose.msra.mxu0 0.0
        %612 = vmatpush.xpose.msra.mxu0 0.0
        %613 = vmatpush.xpose.msra.mxu0 0.0
        %614 = vmatpush.xpose.msra.mxu0 0.0
        %615 = vmatpush.xpose.msra.mxu0 0.0
        %616 = vmatpush.xpose.msra.mxu0 0.0
        %617 = vmatpush.xpose.msra.mxu0 0.0
        %618 = vmatpush.xpose.msra.mxu0 0.0
        %619 = vmatpush.xpose.msra.mxu0 0.0
        %620 = vmatpush.xpose.msra.mxu0 0.0
        %621 = vmatpush.xpose.msra.mxu0 0.0
        %622 = vmatpush.xpose.msra.mxu0 0.0
        %623 = vmatpush.xpose.msra.mxu0 0.0
        %624 = vmatpush.xpose.msra.mxu0 %v607
        %625 = vmatmul.f32.gmra.mxu0 %v605
        %v626 = vpop.f32.mrf.mxu0
        %v627 = vadd.f32 0.0, %v626
        %628 = vdwg.mxu0
        %v629 = vsel %vm349, %v627, -inf
        %630 = vmax.xlane.f32.xlu0 %v629
        %v631 = vpop.xlane.xlu0 %630
        %v632 = vsub.f32 %v627, %v631
        %v633 = vmul.f32 %v632, 1.442695
        %v634 = vpow.pop %v633
        %v635 = vsel %vm349, %v634, 0.0
        %636 = vadd.xlane.f32.xlu0 %v635
        %v637 = vpop.xlane.xlu0 %636
        %v638 = vrcp.pop %v637
        %v639 = vmul.f32 %v637, %v638
        %v640 = vsub.f32 1.0, %v639
        %v641 = vmul.f32 %v638, %v640
        %v642 = vadd.f32 %v638, %v641
        %vm643 = vweird.f32 %v637
        %vm644 = vweird.f32 %v638
        %vm645 = vmor %vm643, %vm644
        %v646 = vsel %vm645, %v638, %v642
        %v647 = vand.u32 2147483647, %v637
        %vm648 = vcmp.eq.f32.partialorder %v647, 8.507059e+37
        %v649 = vand.u32 %v637, 2147483648
        %v650 = vor.u32 1.1754944e-38, %v649
        %v651 = vsel %vm648, %v650, %v646
        %v652 = vmul.f32 1.0, %v651
        %v653 = vmul.f32 %v634, %v652
        %s654 = scalar_lea.vmem %s312, 24 [#allocation10]
        %655 = vst.msk [vmem:[%s654] sm:$0xff] %vm349, %v653
        %656 = vrot.lane.b32.xlu0 %v344, 40
        %v657 = vpop.permute.xlu0 %656
        %v660 = vsel %vm349, %v653, 0
        %662 = vmatpush.msra.mxu0 0.0
        %663 = vmatpush.msra.mxu0 0.0
        %664 = vmatpush.msra.mxu0 0.0
        %665 = vmatpush.msra.mxu0 0.0
        %666 = vmatpush.msra.mxu0 0.0
        %667 = vmatpush.msra.mxu0 0.0
        %668 = vmatpush.msra.mxu0 0.0
        %669 = vmatpush.msra.mxu0 0.0
        %670 = vmatpush.msra.mxu0 0.0
        %671 = vmatpush.msra.mxu0 0.0
        %672 = vmatpush.msra.mxu0 0.0
        %673 = vmatpush.msra.mxu0 0.0
        %674 = vmatpush.msra.mxu0 0.0
        %675 = vmatpush.msra.mxu0 0.0
        %676 = vmatpush.msra.mxu0 0.0
        %677 = vmatpush.msra.mxu0 %v657
        %678 = vmatmul.f32.gmra.mxu0 %v660
        %v679 = vpop.f32.mrf.mxu0
        %v680 = vadd.f32 0.0, %v679
        %681 = vdwg.mxu0
        %683 = vrot.lane.b32.xlu0 %v680, 24
        %v684 = vpop.permute.xlu0 %683
        %vm686 = vcmask 261312
        %687 = vst.msk [vmem:[#allocation2] sm:$0xff] %vm686, %v684
        %v688 = vld [vmem:[#allocation2] sm:$0xff]
        %v689 = vld [vmem:[#allocation8] sm:$0xff]
        %v690 = vld [vmem:[#allocation8 + $0x8] sm:$0xff]
        %v691 = vld [vmem:[#allocation8 + $0x10] sm:$0xff]
        %v692 = vld [vmem:[#allocation8 + $0x18] sm:$0xff]
        %v693 = vld [vmem:[%s4] sm:$0x1]
        %v695 = vperm.slane %v693, 0
        %v698 = vsel %vm322, %v688, 0
        %700 = vmatpush.msra.mxu0 0.0
        %701 = vmatpush.msra.mxu0 0.0
        %702 = vmatpush.msra.mxu0 0.0
        %703 = vmatpush.msra.mxu0 0.0
        %704 = vmatpush.msra.mxu0 0.0
        %705 = vmatpush.msra.mxu0 0.0
        %706 = vmatpush.msra.mxu0 0.0
        %707 = vmatpush.msra.mxu0 0.0
        %708 = vmatpush.msra.mxu0 0.0
        %709 = vmatpush.msra.mxu0 0.0
        %710 = vmatpush.msra.mxu0 0.0
        %711 = vmatpush.msra.mxu0 0.0
        %712 = vmatpush.msra.mxu0 %v692
        %713 = vmatpush.msra.mxu0 %v691
        %714 = vmatpush.msra.mxu0 %v690
        %715 = vmatpush.msra.mxu0 %v689
        %716 = vmatmul.f32.gmra.mxu0 %v698
        %v717 = vpop.f32.mrf.mxu0
        %v718 = vadd.f32 %v695, %v717
        %719 = vdwg.mxu0
        %720 = vst.msk [vmem:[%s305] sm:$0xff] %vm322, %v718
        %s721 = sand.u32 %s146, 1
        %s722 = scalar_lea.sflag [#allocation5], %s721
        %s723 = sand.u32 %s146, 1
        %s724 = smul.addr %s723, 8
        %s725 = scalar_lea.vmem [#allocation9], %s724
        %s726 = sand.u32 %s172, 1
        %s727 = scalar_lea.sflag [#allocation11], %s726
        %s728 = sand.u32 %s172, 1
        %s729 = smul.addr %s728, 32
        %s730 = scalar_lea.vmem [#allocation10], %s729
        // Predicated region
        $region53: #{tpu_custom_call.1} parent=39 // pred_check
          %p731 = pneg %p156
        $region54: #{tpu_custom_call.1} parent=39 // pred_check_branch
          %733 = sbr.rel (%p731) target = $region56
        $region55: #{tpu_custom_call.1} parent=39 // pred_region
          %735 = vsyncadd %s722, 0
          %s736 = smul.addr %s28, 8
          %s737 = scalar_lea.hbm %s5, %s736
          %s739 = sshll.u32 %s725, 4
          %s740 = int_to_ptr.vmem [resolvable:$true] %s739
          %s741 = sshll.u32 %s737, 4
          %s742 = int_to_ptr.hbm [resolvable:$true] %s741
          %744 = dma.vmem_to_hbm [thread:$0]  %s740, 128, %s742, %s722
        $region56: #{tpu_custom_call.1} parent=39 // pred_fallthru
          _
        // Predicated region
        $region57: #{tpu_custom_call.1} parent=39 // pred_check
          %p745 = pneg %p182
        $region58: #{tpu_custom_call.1} parent=39 // pred_check_branch
          %747 = sbr.rel (%p745) target = $region60
        $region59: #{tpu_custom_call.1} parent=39 // pred_region
          %749 = vsyncadd %s727, 0
          %s750 = smul.addr %s28, 4
          %s751 = smul.addr %s750, 8
          %s752 = scalar_lea.hbm %s6, %s751
          %s753 = sshll.u32 %s730, 4
          %s754 = int_to_ptr.vmem [resolvable:$true] %s753
          %s755 = sshll.u32 %s752, 4
          %s756 = int_to_ptr.hbm [resolvable:$true] %s755
          %761 = dma.vmem_to_hbm [thread:$0]  %s754, 512, %s756, %s727, 128, 128, 8
        $region60: #{tpu_custom_call.1} parent=39 // pred_fallthru
          _
      $region40: #{tpu_custom_call.1} parent=5 // pred_fallthru
        _
      %p762 = scmp.le.s32.totalorder 2, %s23
      // Predicated region
      $region61: #{tpu_custom_call.1} parent=5 // pred_check
        %p763 = pneg %p762
      $region62: #{tpu_custom_call.1} parent=5 // pred_check_branch
        %765 = sbr.rel (%p763) target = $region64
      $region63: #{tpu_custom_call.1} parent=5 // pred_region
        %s766 = ssub.s32 %s23, 2
        // Predicated region
        $region65: #{tpu_custom_call.1} parent=63 // pred_check
          %p767 = pneg %p162
        $region66: #{tpu_custom_call.1} parent=63 // pred_check_branch
          %769 = sbr.rel (%p767) target = $region68
        $region67: #{tpu_custom_call.1} parent=63 // pred_region
          %s770 = sand.u32 %s147, 1
          %s771 = scalar_lea.sflag [#allocation5], %s770
          %s772 = sand.u32 %s147, 1
          %s773 = smul.addr %s772, 8
          %s774 = scalar_lea.vmem [#allocation9], %s773
          %776 = dma.done %s771, 128
        $region68: #{tpu_custom_call.1} parent=63 // pred_fallthru
          _
        // Predicated region
        $region69: #{tpu_custom_call.1} parent=63 // pred_check
          %p777 = pneg %p188
        $region70: #{tpu_custom_call.1} parent=63 // pred_check_branch
          %779 = sbr.rel (%p777) target = $region72
        $region71: #{tpu_custom_call.1} parent=63 // pred_region
          %s780 = sand.u32 %s173, 1
          %s781 = scalar_lea.sflag [#allocation11], %s780
          %s782 = sand.u32 %s173, 1
          %s783 = smul.addr %s782, 32
          %s784 = scalar_lea.vmem [#allocation10], %s783
          %786 = dma.done %s781, 512
        $region72: #{tpu_custom_call.1} parent=63 // pred_fallthru
          _
      $region64: #{tpu_custom_call.1} parent=5 // pred_fallthru
        _
    $region6: #{tpu_custom_call.1} parent=1 // loop_footer
      %s27 = sadd.s32 1, %s23
    $region7: #{tpu_custom_call.1} parent=1 // loop_footer_branch
      %22 = sbr.rel target = $region3
    $region8: #{tpu_custom_call.1} parent=1 // loop_exit
      _
    %787 = vsyncpa [#allocation4], 1
    %s788 = scalar_lea.sflag [#allocation4], 1
    %789 = vsyncpa %s788, 1
    %790 = vsyncpa [#allocation7], 1
    %791 = vsyncpa [#allocation5], 1
    %s792 = scalar_lea.sflag [#allocation5], 1
    %793 = vsyncpa %s792, 1
    %794 = vsyncpa [#allocation11], 1
    %s795 = scalar_lea.sflag [#allocation11], 1
    %796 = vsyncpa %s795, 1

</llo_original>
